<compile_context>
chip_gen: v7x
topology: tpu7x:2x2x1
jax: 0.10.0
libtpu: 0.0.40
codegen_flags: <defaults>
</compile_context>

<pallas_src>
import functools

import jax
import jax.numpy as jnp
from jax import lax
from jax.experimental import pallas as pl
from jax.experimental.pallas import tpu as pltpu

_LANE = 128


def _round_up(n, m):
    return ((n + m - 1) // m) * m


def _vmem_limit_bytes():
    """Scoped VMEM limit derived from the actual chip (v5e/v6e: 128 MiB, v7x: 64 MiB)."""
    cap = None
    try:
        cap = getattr(pltpu.get_tpu_info(), "vmem_capacity_bytes", None)
    except Exception:
        cap = None
    if not cap:
        cap = 64 * 1024 * 1024          # conservative fallback (v7x per-TC VMEM)
    return int(min(cap * 5 // 8, 96 * 1024 * 1024))


def _choose_seq_tile(S, K):
    """Largest sequence tile <= 256 that divides S (keeps per-step DMA in the MiB range)."""
    for cand in (256, 128, 64, 32, 16, 8):
        if S % cand == 0 and cand >= K - 1:
            return cand
    return S                             # awkward S: one sequence step (S >= K is asserted)


def _choose_seq_chunk(tS):
    """Sub-chunk for the in-kernel streaming reduce (bounds vreg live ranges)."""
    for cand in (32, 16, 8, 4, 2, 1):
        if tS % cand == 0:
            return cand
    return tS


def _choose_batch_tile(B, per_row_bytes, budget_bytes):
    """Batch tile sized from the VMEM budget; multiple of 8 so the out block is sublane-aligned."""
    if B < 8:
        return B                         # out block second-minor dim == full B (layout rule)
    fit = max(8, (budget_bytes // max(per_row_bytes, 1)) // 8 * 8)
    tb = min(fit, (B // 8) * 8)
    if B >= 16:
        # keep >= 2 steps on the "parallel" batch axis so both v7x TensorCores get work
        tb = min(tb, _round_up((B + 1) // 2, 8))
    return max(tb, 8)


def _head_kernel(x_ref, wsum_ref, whead_ref, wtail_ref, bconv_ref,
                 wdense_ref, bdense_ref, wfc_ref, bfc_ref,
                 out_ref, conv_acc, *, k_edge, inv_len, seq_chunk):
    # x_ref:      [tb, tS, H]   one (batch, sequence) tile, native dtype
    # wsum_ref:   [H, Cp]       sum_k conv_w[k]
    # whead_ref:  [k_edge*H, Cp] prefix weight deficits (multiply first K-1 rows of x)
    # wtail_ref:  [k_edge*H, Cp] suffix weight deficits (multiply last  K-1 rows of x)
    # out_ref:    [tb, Op]      softmax probabilities (class-padded lanes -> 0)
    # conv_acc:   [tb, Cp]      f32 scratch, accumulated across the sequence grid axis
    s = pl.program_id(1)
    tb, tS, H = x_ref.shape

    # --- first sequence tile: init accumulator with the head-row deficit -----
    @pl.when(s == 0)
    def _init():
        head = x_ref[:, 0:k_edge, :].astype(jnp.float32).reshape(tb, k_edge * H)
        conv_acc[...] = -jnp.dot(head, whead_ref[...],
                                 preferred_element_type=jnp.float32)

    # --- every tile: streaming chunked reduce over the sequence (f32 acc) ----
    n_chunks = tS // seq_chunk

    def _chunk(i, acc):
        off = pl.multiple_of(i * seq_chunk, seq_chunk)
        return acc + jnp.sum(x_ref[:, pl.ds(off, seq_chunk), :],
                             axis=1, dtype=jnp.float32)

    tile_sum = lax.fori_loop(0, n_chunks, _chunk,
                             jnp.zeros((tb, H), jnp.float32),
                             unroll=(n_chunks <= 8))
    conv_acc[...] = conv_acc[...] + jnp.dot(tile_sum, wsum_ref[...],
                                            preferred_element_type=jnp.float32)

    # --- last sequence tile: tail-row deficit + fused epilogue ---------------
    @pl.when(s == pl.num_programs(1) - 1)
    def _finish():
        tail = x_ref[:, tS - k_edge:tS, :].astype(jnp.float32).reshape(tb, k_edge * H)
        acc = conv_acc[...] - jnp.dot(tail, wtail_ref[...],
                                      preferred_element_type=jnp.float32)
        pooled = acc * inv_len + bconv_ref[...]
        # dropout (p=0.5) is identity in eval mode
        h = jnp.tanh(jnp.dot(pooled, wdense_ref[...],
                             preferred_element_type=jnp.float32) + bdense_ref[...])
        logits = jnp.dot(h, wfc_ref[...],
                         preferred_element_type=jnp.float32) + bfc_ref[...]
        m = jnp.max(logits, axis=-1, keepdims=True)
        e = jnp.exp(logits - m)                      # padded classes: exp(-1e30 - m) == 0
        out_ref[...] = (e / jnp.sum(e, axis=-1, keepdims=True)).astype(out_ref.dtype)


def prepare_head_params(w_conv, b_conv, w_dense, b_dense, w_fc, b_fc):
    """One-time (hoisted) weight relayout; call once per model, reuse every forward."""
    C, H, K = w_conv.shape
    HID = w_dense.shape[0]
    O = w_fc.shape[0]
    f32 = jnp.float32
    Cp, Hp, Op = _round_up(C, _LANE), _round_up(HID, _LANE), _round_up(O, _LANE)

    wk = jnp.pad(jnp.transpose(w_conv, (2, 1, 0)).astype(f32),
                 ((0, 0), (0, 0), (0, Cp - C)))                    # [K, H, Cp]
    wsum = jnp.sum(wk, axis=0)                                     # [H, Cp]
    k_edge = max(K - 1, 1)
    if K > 1:
        # whead[t] multiplies x[t]        (t = 0..K-2):  sum_{k>t}  conv_w[k]
        # wtail[p] multiplies x[S-(K-1)+p] (p = 0..K-2): sum_{k<=p} conv_w[k]
        whead = jnp.stack([jnp.sum(wk[t + 1:], axis=0) for t in range(K - 1)])
        wtail = jnp.stack([jnp.sum(wk[:p + 1], axis=0) for p in range(K - 1)])
    else:
        whead = jnp.zeros((1, H, Cp), f32)
        wtail = jnp.zeros((1, H, Cp), f32)
    whead = whead.reshape(k_edge * H, Cp)
    wtail = wtail.reshape(k_edge * H, Cp)

    bconv = jnp.pad(b_conv.astype(f32), (0, Cp - C)).reshape(1, Cp)
    wdense = jnp.pad(w_dense.T.astype(f32), ((0, Cp - C), (0, Hp - HID)))
    bdense = jnp.pad(b_dense.astype(f32), (0, Hp - HID)).reshape(1, Hp)
    wfc = jnp.pad(w_fc.T.astype(f32), ((0, Hp - HID), (0, Op - O)))
    bfc = jnp.concatenate([b_fc.astype(f32),
                           jnp.full((Op - O,), -1e30, f32)]).reshape(1, Op)
    return dict(K=K, H=H, n_classes=O, k_edge=k_edge,
                wsum=wsum, whead=whead, wtail=wtail, bconv=bconv,
                wdense=wdense, bdense=bdense, wfc=wfc, bfc=bfc)


def transformer_conv1d_head(x, params):
    """x: [B, S, H] backbone output (any float dtype; bf16 halves HBM traffic)."""
    B, S, H = x.shape
    K = params["K"]
    assert params["H"] == H
    L = S - K + 1
    assert L > 0, "sequence must be at least the conv kernel size"
    k_edge = params["k_edge"]

    wsum, whead, wtail = params["wsum"], params["whead"], params["wtail"]
    bconv, wdense, bdense = params["bconv"], params["wdense"], params["bdense"]
    wfc, bfc = params["wfc"], params["bfc"]
    Cp, Op = wsum.shape[1], bfc.shape[1]

    # ---- per-generation tiling / explicit VMEM budget ----
    vmem_limit = _vmem_limit_bytes()
    tS = _choose_seq_tile(S, K)
    seq_chunk = _choose_seq_chunk(tS)
    weight_bytes = sum(int(a.size) * a.dtype.itemsize
                       for a in (wsum, whead, wtail, bconv, wdense, bdense, wfc, bfc))
    budget_x = max(vmem_limit - 2 * weight_bytes - 4 * 1024 * 1024, 1 * 1024 * 1024)
    per_row = 2 * tS * H * x.dtype.itemsize        # double-buffered x stream per batch row
    tb = _choose_batch_tile(B, per_row, budget_x)
    grid = (pl.cdiv(B, tb), S // tS)               # no batch padding of x in HBM

    kernel = functools.partial(_head_kernel, k_edge=k_edge, inv_len=1.0 / L,
                               seq_chunk=seq_chunk)

    out = pl.pallas_call(
        kernel,
        out_shape=jax.ShapeDtypeStruct((B, Op), jnp.float32),
        grid_spec=pltpu.PrefetchScalarGridSpec(
            num_scalar_prefetch=0,
            grid=grid,
            in_specs=[
                pl.BlockSpec((tb, tS, H), lambda b, s: (b, s, 0)),   # streamed x tiles
                # small weights: constant index maps -> DMA'd once, stay resident
                pl.BlockSpec(wsum.shape, lambda b, s: (0, 0)),
                pl.BlockSpec(whead.shape, lambda b, s: (0, 0)),
                pl.BlockSpec(wtail.shape, lambda b, s: (0, 0)),
                pl.BlockSpec(bconv.shape, lambda b, s: (0, 0)),
                pl.BlockSpec(wdense.shape, lambda b, s: (0, 0)),
                pl.BlockSpec(bdense.shape, lambda b, s: (0, 0)),
                pl.BlockSpec(wfc.shape, lambda b, s: (0, 0)),
                pl.BlockSpec(bfc.shape, lambda b, s: (0, 0)),
            ],
            out_specs=pl.BlockSpec((tb, Op), lambda b, s: (b, 0)),
            scratch_shapes=[pltpu.VMEM((tb, Cp), jnp.float32)],
        ),
        compiler_params=pltpu.CompilerParams(
            dimension_semantics=("parallel", "arbitrary"),
            vmem_limit_bytes=int(vmem_limit)),
    )(x, wsum, whead, wtail, bconv, wdense, bdense, wfc, bfc)

    # strip class-lane padding (layout plumbing, not compute)
    return out[:, :params["n_classes"]]


def reference_head(x, w_conv, b_conv, w_dense, b_dense, w_fc, b_fc):
    """Pure-JAX reference mirroring the PyTorch forward (eval mode)."""
    C, H, K = w_conv.shape
    L = x.shape[1] - K + 1
    conv = sum(jnp.einsum('blh,ch->blc', x[:, k:k + L, :], w_conv[:, :, k])
               for k in range(K)) + b_conv[None, None, :]
    pooled = jnp.mean(conv, axis=1)
    h = jnp.tanh(pooled @ w_dense.T + b_dense)
    logits = h @ w_fc.T + b_fc
    return jax.nn.softmax(logits, axis=1)


if __name__ == "__main__":
    # Small shapes consistent with the module's forward:
    # B not a multiple of the batch tile (exercises the no-padding partial tile),
    # S a multiple of a small sequence tile (exercises the multi-step accumulator).
    B, S, H = 10, 48, 64        # batch, seq, transformer hidden_size
    C, K = 8, 3                 # conv_out_channels, conv_kernel_size
    HID, OUT = 16, 4            # hidden_dim, output_dim

    key = jax.random.PRNGKey(0)
    ks = jax.random.split(key, 7)
    x = jax.random.normal(ks[0], (B, S, H), dtype=jnp.float32)
    w_conv = jax.random.normal(ks[1], (C, H, K), dtype=jnp.float32) * 0.05
    b_conv = jax.random.normal(ks[2], (C,), dtype=jnp.float32) * 0.05
    w_dense = jax.random.normal(ks[3], (HID, C), dtype=jnp.float32) * 0.1
    b_dense = jax.random.normal(ks[4], (HID,), dtype=jnp.float32) * 0.1
    w_fc = jax.random.normal(ks[5], (OUT, HID), dtype=jnp.float32) * 0.1
    b_fc = jax.random.normal(ks[6], (OUT,), dtype=jnp.float32) * 0.1

    # hoisted once-per-model weight relayout
    params = prepare_head_params(w_conv, b_conv, w_dense, b_dense, w_fc, b_fc)

    probs = jax.block_until_ready(transformer_conv1d_head(x, params))
    ref = reference_head(x, w_conv, b_conv, w_dense, b_dense, w_fc, b_fc)
    assert probs.shape == (B, OUT)
    assert jnp.allclose(jnp.sum(probs, axis=1), 1.0, atol=1e-4)
    assert jnp.allclose(probs, ref, atol=1e-3, rtol=1e-3)

    # bf16 streaming path (halves HBM bytes of the dominant x read; f32 accumulation)
    x_bf16 = x.astype(jnp.bfloat16)
    probs_bf16 = jax.block_until_ready(transformer_conv1d_head(x_bf16, params))
    ref_bf16 = reference_head(x_bf16.astype(jnp.float32), w_conv, b_conv,
                              w_dense, b_dense, w_fc, b_fc)
    assert jnp.allclose(probs_bf16, ref_bf16, atol=2e-3, rtol=2e-3)

    print("KERNEL_OK")
</pallas_src>

<mosaic_0001>
module attributes {stable_mosaic.version = 11 : i64} {
  func.func @_head_kernel(%arg0: i32, %arg1: i32, %arg2: memref<8x16x64xf32, #tpu.memory_space<vmem>>, %arg3: memref<64x128xf32, #tpu.memory_space<vmem>>, %arg4: memref<128x128xf32, #tpu.memory_space<vmem>>, %arg5: memref<128x128xf32, #tpu.memory_space<vmem>>, %arg6: memref<1x128xf32, #tpu.memory_space<vmem>>, %arg7: memref<128x128xf32, #tpu.memory_space<vmem>>, %arg8: memref<1x128xf32, #tpu.memory_space<vmem>>, %arg9: memref<128x128xf32, #tpu.memory_space<vmem>>, %arg10: memref<1x128xf32, #tpu.memory_space<vmem>>, %arg11: memref<8x128xf32, #tpu.memory_space<vmem>>, %arg12: memref<8x128xf32, #tpu.memory_space<vmem>>) attributes {dimension_semantics = [#tpu.dimension_semantics<parallel>, #tpu.dimension_semantics<arbitrary>], iteration_bounds = array<i64: 2, 3>, scalar_prefetch = 0 : i64, scratch_operands = 1 : i64, tpu.core_type = #tpu.core_type<tc>, window_params = [{transform_indices = @transform_0, window_bounds = array<i64: 8, 16, 64>}, {pipeline_mode = #tpu.pipeline_mode<synchronous>, transform_indices = @transform_1, window_bounds = array<i64: 64, 128>}, {pipeline_mode = #tpu.pipeline_mode<synchronous>, transform_indices = @transform_2, window_bounds = array<i64: 128, 128>}, {pipeline_mode = #tpu.pipeline_mode<synchronous>, transform_indices = @transform_3, window_bounds = array<i64: 128, 128>}, {pipeline_mode = #tpu.pipeline_mode<synchronous>, transform_indices = @transform_4, window_bounds = array<i64: 1, 128>}, {pipeline_mode = #tpu.pipeline_mode<synchronous>, transform_indices = @transform_5, window_bounds = array<i64: 128, 128>}, {pipeline_mode = #tpu.pipeline_mode<synchronous>, transform_indices = @transform_6, window_bounds = array<i64: 1, 128>}, {pipeline_mode = #tpu.pipeline_mode<synchronous>, transform_indices = @transform_7, window_bounds = array<i64: 128, 128>}, {pipeline_mode = #tpu.pipeline_mode<synchronous>, transform_indices = @transform_8, window_bounds = array<i64: 1, 128>}, {transform_indices = @transform_9, window_bounds = array<i64: 8, 128>}]} {
    %c0_i32 = arith.constant 0 : i32
    %0 = arith.cmpi eq, %arg1, %c0_i32 : i32
    %1 = arith.extui %0 : i1 to i32
    %c0_i32_0 = arith.constant 0 : i32
    %2 = arith.cmpi ne, %1, %c0_i32_0 : i32
    scf.if %2 {
      %c0_12 = arith.constant 0 : index
      %c0_13 = arith.constant 0 : index
      %c0_14 = arith.constant 0 : index
      %18 = vector.load %arg2[%c0_12, %c0_13, %c0_14] : memref<8x16x64xf32, #tpu.memory_space<vmem>>, vector<8x2x64xf32>
      %19 = vector.shape_cast %18 : vector<8x2x64xf32> to vector<8x128xf32>
      %c0_15 = arith.constant 0 : index
      %c0_16 = arith.constant 0 : index
      %20 = vector.load %arg4[%c0_15, %c0_16] : memref<128x128xf32, #tpu.memory_space<vmem>>, vector<128x128xf32>
      %cst_17 = arith.constant dense<0.000000e+00> : vector<8x128xf32>
      %21 = tpu.matmul %19, %20, %cst_17 {dimension_numbers = #tpu.dot_dimension_numbers<[1], [0], [0], [1], [0, 0, 1, 1], [], []>} : vector<8x128xf32>, vector<128x128xf32>, vector<8x128xf32> -> vector<8x128xf32>
      %cst_18 = arith.constant 0.000000e+00 : f32
      %22 = vector.broadcast %cst_18 : f32 to vector<8x128xf32>
      %23 = arith.subf %22, %21 : vector<8x128xf32>
      %c0_19 = arith.constant 0 : index
      %c0_20 = arith.constant 0 : index
      %24 = vector.load %arg12[%c0_19, %c0_20] : memref<8x128xf32, #tpu.memory_space<vmem>>, vector<8x128xf32>
      tpu.vector_store %arg12[%c0_19, %c0_20], %23 {strides = array<i32>} : memref<8x128xf32, #tpu.memory_space<vmem>>, vector<8x128xf32>,
    } else {
    }
    %cst = arith.constant 0.000000e+00 : f32
    %3 = vector.broadcast %cst : f32 to vector<8x64xf32>
    %c0_i32_1 = arith.constant 0 : i32
    %c16_i32 = arith.constant 16 : i32
    %4 = arith.muli %c0_i32_1, %c16_i32 : i32
    %5 = tpu.assume_multiple %4, 16 : i32
    %c0 = arith.constant 0 : index
    %6 = arith.index_cast %5 : i32 to index
    %c0_2 = arith.constant 0 : index
    %7 = vector.load %arg2[%c0, %6, %c0_2] : memref<8x16x64xf32, #tpu.memory_space<vmem>>, vector<8x16x64xf32>
    %cst_3 = arith.constant dense<0.000000e+00> : vector<8x64xf32>
    %8 = vector.multi_reduction <add>, %7, %cst_3 [1] : vector<8x16x64xf32> to vector<8x64xf32>
    %9 = arith.addf %3, %8 : vector<8x64xf32>
    %c1_i32 = arith.constant 1 : i32
    %c0_4 = arith.constant 0 : index
    %c0_5 = arith.constant 0 : index
    %10 = vector.load %arg12[%c0_4, %c0_5] : memref<8x128xf32, #tpu.memory_space<vmem>>, vector<8x128xf32>
    %c0_6 = arith.constant 0 : index
    %c0_7 = arith.constant 0 : index
    %11 = vector.load %arg3[%c0_6, %c0_7] : memref<64x128xf32, #tpu.memory_space<vmem>>, vector<64x128xf32>
    %cst_8 = arith.constant dense<0.000000e+00> : vector<8x128xf32>
    %12 = tpu.matmul %9, %11, %cst_8 {dimension_numbers = #tpu.dot_dimension_numbers<[1], [0], [0], [1], [0, 0, 1, 1], [], []>} : vector<8x64xf32>, vector<64x128xf32>, vector<8x128xf32> -> vector<8x128xf32>
    %13 = arith.addf %10, %12 : vector<8x128xf32>
    %c0_9 = arith.constant 0 : index
    %c0_10 = arith.constant 0 : index
    %14 = vector.load %arg12[%c0_9, %c0_10] : memref<8x128xf32, #tpu.memory_space<vmem>>, vector<8x128xf32>
    tpu.vector_store %arg12[%c0_9, %c0_10], %13 {strides = array<i32>} : memref<8x128xf32, #tpu.memory_space<vmem>>, vector<8x128xf32>,
    %c2_i32 = arith.constant 2 : i32
    %15 = arith.cmpi eq, %arg1, %c2_i32 : i32
    %16 = arith.extui %15 : i1 to i32
    %c0_i32_11 = arith.constant 0 : i32
    %17 = arith.cmpi ne, %16, %c0_i32_11 : i32
    scf.if %17 {
      %c0_12 = arith.constant 0 : index
      %c14 = arith.constant 14 : index
      %c0_13 = arith.constant 0 : index
      %18 = vector.load %arg2[%c0_12, %c14, %c0_13] : memref<8x16x64xf32, #tpu.memory_space<vmem>>, vector<8x2x64xf32>
      %19 = vector.shape_cast %18 : vector<8x2x64xf32> to vector<8x128xf32>
      %c0_14 = arith.constant 0 : index
      %c0_15 = arith.constant 0 : index
      %20 = vector.load %arg12[%c0_14, %c0_15] : memref<8x128xf32, #tpu.memory_space<vmem>>, vector<8x128xf32>
      %c0_16 = arith.constant 0 : index
      %c0_17 = arith.constant 0 : index
      %21 = vector.load %arg5[%c0_16, %c0_17] : memref<128x128xf32, #tpu.memory_space<vmem>>, vector<128x128xf32>
      %cst_18 = arith.constant dense<0.000000e+00> : vector<8x128xf32>
      %22 = tpu.matmul %19, %21, %cst_18 {dimension_numbers = #tpu.dot_dimension_numbers<[1], [0], [0], [1], [0, 0, 1, 1], [], []>} : vector<8x128xf32>, vector<128x128xf32>, vector<8x128xf32> -> vector<8x128xf32>
      %23 = arith.subf %20, %22 : vector<8x128xf32>
      %cst_19 = arith.constant 0.0217391308 : f32
      %24 = vector.broadcast %cst_19 : f32 to vector<8x128xf32>
      %25 = arith.mulf %23, %24 : vector<8x128xf32>
      %c0_20 = arith.constant 0 : index
      %c0_21 = arith.constant 0 : index
      %26 = vector.load %arg6[%c0_20, %c0_21] : memref<1x128xf32, #tpu.memory_space<vmem>>, vector<1x128xf32>
      %27 = vector.broadcast %26 : vector<1x128xf32> to vector<8x128xf32>
      %28 = arith.addf %25, %27 : vector<8x128xf32>
      %c0_22 = arith.constant 0 : index
      %c0_23 = arith.constant 0 : index
      %29 = vector.load %arg7[%c0_22, %c0_23] : memref<128x128xf32, #tpu.memory_space<vmem>>, vector<128x128xf32>
      %cst_24 = arith.constant dense<0.000000e+00> : vector<8x128xf32>
      %30 = tpu.matmul %28, %29, %cst_24 {dimension_numbers = #tpu.dot_dimension_numbers<[1], [0], [0], [1], [0, 0, 1, 1], [], []>} : vector<8x128xf32>, vector<128x128xf32>, vector<8x128xf32> -> vector<8x128xf32>
      %c0_25 = arith.constant 0 : index
      %c0_26 = arith.constant 0 : index
      %31 = vector.load %arg8[%c0_25, %c0_26] : memref<1x128xf32, #tpu.memory_space<vmem>>, vector<1x128xf32>
      %32 = vector.broadcast %31 : vector<1x128xf32> to vector<8x128xf32>
      %33 = arith.addf %30, %32 : vector<8x128xf32>
      %34 = math.tanh %33 : vector<8x128xf32>
      %c0_27 = arith.constant 0 : index
      %c0_28 = arith.constant 0 : index
      %35 = vector.load %arg9[%c0_27, %c0_28] : memref<128x128xf32, #tpu.memory_space<vmem>>, vector<128x128xf32>
      %cst_29 = arith.constant dense<0.000000e+00> : vector<8x128xf32>
      %36 = tpu.matmul %34, %35, %cst_29 {dimension_numbers = #tpu.dot_dimension_numbers<[1], [0], [0], [1], [0, 0, 1, 1], [], []>} : vector<8x128xf32>, vector<128x128xf32>, vector<8x128xf32> -> vector<8x128xf32>
      %c0_30 = arith.constant 0 : index
      %c0_31 = arith.constant 0 : index
      %37 = vector.load %arg10[%c0_30, %c0_31] : memref<1x128xf32, #tpu.memory_space<vmem>>, vector<1x128xf32>
      %38 = vector.broadcast %37 : vector<1x128xf32> to vector<8x128xf32>
      %39 = arith.addf %36, %38 : vector<8x128xf32>
      %cst_32 = arith.constant dense<0xFF800000> : vector<8xf32>
      %40 = vector.multi_reduction <maximumf>, %39, %cst_32 [1] : vector<8x128xf32> to vector<8xf32>
      %41 = vector.shape_cast %40 : vector<8xf32> to vector<8x1xf32>
      %42 = vector.broadcast %41 : vector<8x1xf32> to vector<8x128xf32>
      %43 = arith.subf %39, %42 : vector<8x128xf32>
      %44 = math.exp %43 : vector<8x128xf32>
      %cst_33 = arith.constant dense<0.000000e+00> : vector<8xf32>
      %45 = vector.multi_reduction <add>, %44, %cst_33 [1] : vector<8x128xf32> to vector<8xf32>
      %46 = vector.shape_cast %45 : vector<8xf32> to vector<8x1xf32>
      %47 = vector.broadcast %46 : vector<8x1xf32> to vector<8x128xf32>
      %48 = arith.divf %44, %47 : vector<8x128xf32>
      %c0_34 = arith.constant 0 : index
      %c0_35 = arith.constant 0 : index
      %49 = vector.load %arg11[%c0_34, %c0_35] : memref<8x128xf32, #tpu.memory_space<vmem>>, vector<8x128xf32>
      tpu.vector_store %arg11[%c0_34, %c0_35], %48 {strides = array<i32>} : memref<8x128xf32, #tpu.memory_space<vmem>>, vector<8x128xf32>,
    } else {
    }
    return
  }
  func.func @transform_0(%arg0: i32, %arg1: i32) -> (i32, i32, i32) {
    %c0_i32 = arith.constant 0 : i32
    %c0_i32_0 = arith.constant 0 : i32
    return %arg0, %arg1, %c0_i32 : i32, i32, i32
  }
  func.func @transform_1(%arg0: i32, %arg1: i32) -> (i32, i32) {
    %c0_i32 = arith.constant 0 : i32
    %c0_i32_0 = arith.constant 0 : i32
    %c0_i32_1 = arith.constant 0 : i32
    return %c0_i32, %c0_i32_0 : i32, i32
  }
  func.func @transform_2(%arg0: i32, %arg1: i32) -> (i32, i32) {
    %c0_i32 = arith.constant 0 : i32
    %c0_i32_0 = arith.constant 0 : i32
    %c0_i32_1 = arith.constant 0 : i32
    return %c0_i32, %c0_i32_0 : i32, i32
  }
  func.func @transform_3(%arg0: i32, %arg1: i32) -> (i32, i32) {
    %c0_i32 = arith.constant 0 : i32
    %c0_i32_0 = arith.constant 0 : i32
    %c0_i32_1 = arith.constant 0 : i32
    return %c0_i32, %c0_i32_0 : i32, i32
  }
  func.func @transform_4(%arg0: i32, %arg1: i32) -> (i32, i32) {
    %c0_i32 = arith.constant 0 : i32
    %c0_i32_0 = arith.constant 0 : i32
    %c0_i32_1 = arith.constant 0 : i32
    return %c0_i32, %c0_i32_0 : i32, i32
  }
  func.func @transform_5(%arg0: i32, %arg1: i32) -> (i32, i32) {
    %c0_i32 = arith.constant 0 : i32
    %c0_i32_0 = arith.constant 0 : i32
    %c0_i32_1 = arith.constant 0 : i32
    return %c0_i32, %c0_i32_0 : i32, i32
  }
  func.func @transform_6(%arg0: i32, %arg1: i32) -> (i32, i32) {
    %c0_i32 = arith.constant 0 : i32
    %c0_i32_0 = arith.constant 0 : i32
    %c0_i32_1 = arith.constant 0 : i32
    return %c0_i32, %c0_i32_0 : i32, i32
  }
  func.func @transform_7(%arg0: i32, %arg1: i32) -> (i32, i32) {
    %c0_i32 = arith.constant 0 : i32
    %c0_i32_0 = arith.constant 0 : i32
    %c0_i32_1 = arith.constant 0 : i32
    return %c0_i32, %c0_i32_0 : i32, i32
  }
  func.func @transform_8(%arg0: i32, %arg1: i32) -> (i32, i32) {
    %c0_i32 = arith.constant 0 : i32
    %c0_i32_0 = arith.constant 0 : i32
    %c0_i32_1 = arith.constant 0 : i32
    return %c0_i32, %c0_i32_0 : i32, i32
  }
  func.func @transform_9(%arg0: i32, %arg1: i32) -> (i32, i32) {
    %c0_i32 = arith.constant 0 : i32
    %c0_i32_0 = arith.constant 0 : i32
    return %arg0, %c0_i32 : i32, i32
  }
}

</mosaic_0001>

<llo_original>
// kernel: tpu_custom_call.1
$region0: #{tpu_custom_call.1}
  #allocation0 [shape = 'u32[]', space=smem, size = 0x4, offset = 0x4, fixed_abs, tag = 'smem constant byte address 0x4 - core index']
  #allocation1 [shape = 'u32[144,128]{1,0:T(1,128)}', space=vmem, size = 0x12000, scoped, tag = 'internal scratch']
  #allocation2 [shape = 'f32[8,128]{1,0:T(8,128)}', space=vmem, size = 0x1000, scoped, tag = 'scratch operand']
  #allocation15 [shape = 's32[]', space=sflag, size = 0x4, offset = 0, fixed_abs, tag = 'sflag constant byte address 0x0 - dummy sync flag']
  %s0 = inlined_call_operand.hbm [shape: f32[10,48,64], index: 0, kind: input, shape index: {}]
  %s1 = inlined_call_operand.hbm [shape: f32[64,128], index: 1, kind: input, shape index: {}]
  %s2 = inlined_call_operand.hbm [shape: f32[128,128], index: 2, kind: input, shape index: {}]
  %s3 = inlined_call_operand.hbm [shape: f32[128,128], index: 3, kind: input, shape index: {}]
  %s4 = inlined_call_operand.vmem [shape: f32[1,128], index: 4, kind: input, shape index: {}]
  %s5 = inlined_call_operand.hbm [shape: f32[128,128], index: 5, kind: input, shape index: {}]
  %s6 = inlined_call_operand.vmem [shape: f32[1,128], index: 6, kind: input, shape index: {}]
  %s7 = inlined_call_operand.hbm [shape: f32[128,128], index: 7, kind: input, shape index: {}]
  %s8 = inlined_call_operand.vmem [shape: f32[1,128], index: 8, kind: input, shape index: {}]
  %s9 = inlined_call_operand.hbm [shape: f32[10,128], index: 9, kind: output, shape index: {}]
  %s10 = sld [smem:[#allocation0]]
  $region101: #{tpu_custom_call.1} parent=0
    _
  %s12 = ssub.s32 1, %s10
  %s13 = scalar_select 0, %s12, %s10
  $region1: #{tpu_custom_call.1} parent=0
    #allocation3 [shape = 'u8[131072]{0}', space=vmem, size = 0x20000, scoped, tag = 'input window, operand 0']
    #allocation4 [shape = 's32[2]{0}', space=sflag, size = 0x8, scoped, tag = 'scoped memory for tpu_custom_call.1']
    #allocation5 [shape = 's32[2]{0}', space=sflag, size = 0x8, scoped, tag = 'scoped memory for tpu_custom_call.1']
    #allocation6 [shape = 'u8[32768]{0}', space=vmem, size = 0x8000, scoped, tag = 'input window, operand 1, single buffered']
    #allocation7 [shape = 's32[1]{0}', space=sflag, size = 0x4, scoped, tag = 'scoped memory for tpu_custom_call.1']
    #allocation8 [shape = 'u8[65536]{0}', space=vmem, size = 0x10000, scoped, tag = 'input window, operand 2, single buffered']
    #allocation9 [shape = 'u8[65536]{0}', space=vmem, size = 0x10000, scoped, tag = 'input window, operand 3, single buffered']
    #allocation10 [shape = 's32[1]{0}', space=sflag, size = 0x4, scoped, tag = 'scoped memory for tpu_custom_call.1']
    #allocation11 [shape = 'u8[65536]{0}', space=vmem, size = 0x10000, scoped, tag = 'input window, operand 5, single buffered']
    #allocation12 [shape = 'u8[65536]{0}', space=vmem, size = 0x10000, scoped, tag = 'input window, operand 7, single buffered']
    #allocation13 [shape = 's32[1]{0}', space=sflag, size = 0x4, scoped, tag = 'scoped memory for tpu_custom_call.1']
    #allocation14 [shape = 'u8[8192]{0}', space=vmem, size = 0x2000, scoped, tag = 'output window, operand 0']
    %14 = vsyncpa [#allocation4], 0
    %s15 = scalar_lea.sflag [#allocation4], 1
    %16 = vsyncpa %s15, 0
    %17 = vsyncpa [#allocation7], 0
    %18 = vsyncpa [#allocation10], 0
    %19 = vsyncpa [#allocation13], 0
    %20 = vsyncpa [#allocation5], 0
    %s21 = scalar_lea.sflag [#allocation5], 1
    %22 = vsyncpa %s21, 0
    loop: start=0, step=1, limit=8
    $region2: #{tpu_custom_call.1} parent=1 // loop_pre_header
      _
    $region3: #{tpu_custom_call.1} parent=1 // loop_header
      %s24 = sphi 0, %s28
      %p25 = scmp.ge.s32.totalorder %s24, 8
      %s31 = sphi 0, %s43
      %s32 = sphi 0, %s39
      %s33 = sphi 0, %s31
      %s34 = sphi 0, %s32
      %s35 = sphi 0, %s33
      %s36 = sphi 0, %s34
      %s48 = sphi 0, %s50
      %s51 = sphi 0, %s48
      %s52 = sphi 0, %s51
      %s68 = sphi 0, %s52
      %s72 = sphi 0, %s72
      %s74 = sphi 0, %s72
      %s75 = sphi 0, %s74
      %s89 = sphi 0, %s75
      %s93 = sphi 0, %s93
      %s95 = sphi 0, %s93
      %s96 = sphi 0, %s95
      %s110 = sphi 0, %s96
      %s114 = sphi 0, %s114
      %s116 = sphi 0, %s114
      %s117 = sphi 0, %s116
      %s131 = sphi 0, %s117
      %s135 = sphi 0, %s135
      %s137 = sphi 0, %s135
      %s138 = sphi 0, %s137
      %s152 = sphi 0, %s138
      %s156 = sphi 0, %s156
      %s158 = sphi 0, %s156
      %s159 = sphi 0, %s158
      %s173 = sphi 0, %s159
      %s177 = sphi 0, %s177
      %s179 = sphi 0, %s177
      %s180 = sphi 0, %s179
      %s194 = sphi 0, %s180
      %s198 = sphi 0, %s198
      %s200 = sphi 0, %s198
      %s201 = sphi 0, %s200
      %s215 = sphi 0, %s201
      %s219 = sphi 0, %s219
      %s221 = sphi 0, %s219
      %s222 = sphi 0, %s221
      %s236 = sphi 0, %s222
      %s242 = sphi 0, %s244
      %s245 = sphi 0, %s242
      %s246 = sphi 0, %s245
      %s262 = sphi 0, %s246
    $region4: #{tpu_custom_call.1} parent=1 // loop_header_branch
      %27 = sbr.rel (%p25) target = $region8
    $region5: #{tpu_custom_call.1} parent=1 // loop_body
      %s29 = ssub.s32 %s24, 1
      %s30 = ssub.s32 %s24, 2
      %s37 = sadd.s32 1, %s32
      %p38 = scmp.ge.s32.totalorder %s37, 3
      %s39 = scalar_select %p38, 0, %s37
      %s40 = sadd.s32 1, %s31
      %s41 = scalar_select %p38, %s40, %s31
      %p42 = scmp.ge.s32.totalorder %s41, 2
      %s43 = scalar_select %p42, 0, %s41
      %s44 = ssub.s32 %s31, %s43
      %s45 = ssub.s32 %s32, %s39
      %s46 = sor.u32 %s44, %s45
      %p47 = scmp.eq.s32.totalorder %s46, 0
      %s49 = sadd.s32 %s48, 1
      %s50 = scalar_select %p47, %s48, %s49
      %p53 = pneg %p47
      %p54 = scmp.eq.s32.totalorder %s24, 5
      %p55 = por %p53, %p54
      %p56 = scmp.ne.s32.totalorder %s48, %s51
      %p57 = scmp.eq.s32.totalorder %s24, 0
      %p58 = por %p56, %p57
      %p59 = scmp.ne.s32.totalorder %s48, %s51
      %p60 = scmp.eq.s32.totalorder %s29, 5
      %p61 = por %p59, %p60
      %p62 = scmp.ne.s32.totalorder %s51, %s52
      %p63 = scmp.eq.s32.totalorder %s29, 0
      %p64 = por %p62, %p63
      %p65 = scmp.ne.s32.totalorder %s51, %s52
      %p66 = scmp.eq.s32.totalorder %s30, 5
      %p67 = por %p65, %p66
      %p69 = scmp.ne.s32.totalorder %s52, %s68
      %p70 = scmp.eq.s32.totalorder %s30, 0
      %p71 = por %p69, %p70
      %s73 = sadd.s32 %s72, 1
      %p76 = scmp.eq.s32.totalorder %s24, 5
      %p77 = scmp.ne.s32.totalorder %s72, %s74
      %p78 = scmp.eq.s32.totalorder %s24, 0
      %p79 = por %p77, %p78
      %p80 = scmp.ne.s32.totalorder %s72, %s74
      %p81 = scmp.eq.s32.totalorder %s29, 5
      %p82 = por %p80, %p81
      %p83 = scmp.ne.s32.totalorder %s74, %s75
      %p84 = scmp.eq.s32.totalorder %s29, 0
      %p85 = por %p83, %p84
      %p86 = scmp.ne.s32.totalorder %s74, %s75
      %p87 = scmp.eq.s32.totalorder %s30, 5
      %p88 = por %p86, %p87
      %p90 = scmp.ne.s32.totalorder %s75, %s89
      %p91 = scmp.eq.s32.totalorder %s30, 0
      %p92 = por %p90, %p91
      %s94 = sadd.s32 %s93, 1
      %p97 = scmp.eq.s32.totalorder %s24, 5
      %p98 = scmp.ne.s32.totalorder %s93, %s95
      %p99 = scmp.eq.s32.totalorder %s24, 0
      %p100 = por %p98, %p99
      %p101 = scmp.ne.s32.totalorder %s93, %s95
      %p102 = scmp.eq.s32.totalorder %s29, 5
      %p103 = por %p101, %p102
      %p104 = scmp.ne.s32.totalorder %s95, %s96
      %p105 = scmp.eq.s32.totalorder %s29, 0
      %p106 = por %p104, %p105
      %p107 = scmp.ne.s32.totalorder %s95, %s96
      %p108 = scmp.eq.s32.totalorder %s30, 5
      %p109 = por %p107, %p108
      %p111 = scmp.ne.s32.totalorder %s96, %s110
      %p112 = scmp.eq.s32.totalorder %s30, 0
      %p113 = por %p111, %p112
      %s115 = sadd.s32 %s114, 1
      %p118 = scmp.eq.s32.totalorder %s24, 5
      %p119 = scmp.ne.s32.totalorder %s114, %s116
      %p120 = scmp.eq.s32.totalorder %s24, 0
      %p121 = por %p119, %p120
      %p122 = scmp.ne.s32.totalorder %s114, %s116
      %p123 = scmp.eq.s32.totalorder %s29, 5
      %p124 = por %p122, %p123
      %p125 = scmp.ne.s32.totalorder %s116, %s117
      %p126 = scmp.eq.s32.totalorder %s29, 0
      %p127 = por %p125, %p126
      %p128 = scmp.ne.s32.totalorder %s116, %s117
      %p129 = scmp.eq.s32.totalorder %s30, 5
      %p130 = por %p128, %p129
      %p132 = scmp.ne.s32.totalorder %s117, %s131
      %p133 = scmp.eq.s32.totalorder %s30, 0
      %p134 = por %p132, %p133
      %s136 = sadd.s32 %s135, 1
      %p139 = scmp.eq.s32.totalorder %s24, 5
      %p140 = scmp.ne.s32.totalorder %s135, %s137
      %p141 = scmp.eq.s32.totalorder %s24, 0
      %p142 = por %p140, %p141
      %p143 = scmp.ne.s32.totalorder %s135, %s137
      %p144 = scmp.eq.s32.totalorder %s29, 5
      %p145 = por %p143, %p144
      %p146 = scmp.ne.s32.totalorder %s137, %s138
      %p147 = scmp.eq.s32.totalorder %s29, 0
      %p148 = por %p146, %p147
      %p149 = scmp.ne.s32.totalorder %s137, %s138
      %p150 = scmp.eq.s32.totalorder %s30, 5
      %p151 = por %p149, %p150
      %p153 = scmp.ne.s32.totalorder %s138, %s152
      %p154 = scmp.eq.s32.totalorder %s30, 0
      %p155 = por %p153, %p154
      %s157 = sadd.s32 %s156, 1
      %p160 = scmp.eq.s32.totalorder %s24, 5
      %p161 = scmp.ne.s32.totalorder %s156, %s158
      %p162 = scmp.eq.s32.totalorder %s24, 0
      %p163 = por %p161, %p162
      %p164 = scmp.ne.s32.totalorder %s156, %s158
      %p165 = scmp.eq.s32.totalorder %s29, 5
      %p166 = por %p164, %p165
      %p167 = scmp.ne.s32.totalorder %s158, %s159
      %p168 = scmp.eq.s32.totalorder %s29, 0
      %p169 = por %p167, %p168
      %p170 = scmp.ne.s32.totalorder %s158, %s159
      %p171 = scmp.eq.s32.totalorder %s30, 5
      %p172 = por %p170, %p171
      %p174 = scmp.ne.s32.totalorder %s159, %s173
      %p175 = scmp.eq.s32.totalorder %s30, 0
      %p176 = por %p174, %p175
      %s178 = sadd.s32 %s177, 1
      %p181 = scmp.eq.s32.totalorder %s24, 5
      %p182 = scmp.ne.s32.totalorder %s177, %s179
      %p183 = scmp.eq.s32.totalorder %s24, 0
      %p184 = por %p182, %p183
      %p185 = scmp.ne.s32.totalorder %s177, %s179
      %p186 = scmp.eq.s32.totalorder %s29, 5
      %p187 = por %p185, %p186
      %p188 = scmp.ne.s32.totalorder %s179, %s180
      %p189 = scmp.eq.s32.totalorder %s29, 0
      %p190 = por %p188, %p189
      %p191 = scmp.ne.s32.totalorder %s179, %s180
      %p192 = scmp.eq.s32.totalorder %s30, 5
      %p193 = por %p191, %p192
      %p195 = scmp.ne.s32.totalorder %s180, %s194
      %p196 = scmp.eq.s32.totalorder %s30, 0
      %p197 = por %p195, %p196
      %s199 = sadd.s32 %s198, 1
      %p202 = scmp.eq.s32.totalorder %s24, 5
      %p203 = scmp.ne.s32.totalorder %s198, %s200
      %p204 = scmp.eq.s32.totalorder %s24, 0
      %p205 = por %p203, %p204
      %p206 = scmp.ne.s32.totalorder %s198, %s200
      %p207 = scmp.eq.s32.totalorder %s29, 5
      %p208 = por %p206, %p207
      %p209 = scmp.ne.s32.totalorder %s200, %s201
      %p210 = scmp.eq.s32.totalorder %s29, 0
      %p211 = por %p209, %p210
      %p212 = scmp.ne.s32.totalorder %s200, %s201
      %p213 = scmp.eq.s32.totalorder %s30, 5
      %p214 = por %p212, %p213
      %p216 = scmp.ne.s32.totalorder %s201, %s215
      %p217 = scmp.eq.s32.totalorder %s30, 0
      %p218 = por %p216, %p217
      %s220 = sadd.s32 %s219, 1
      %p223 = scmp.eq.s32.totalorder %s24, 5
      %p224 = scmp.ne.s32.totalorder %s219, %s221
      %p225 = scmp.eq.s32.totalorder %s24, 0
      %p226 = por %p224, %p225
      %p227 = scmp.ne.s32.totalorder %s219, %s221
      %p228 = scmp.eq.s32.totalorder %s29, 5
      %p229 = por %p227, %p228
      %p230 = scmp.ne.s32.totalorder %s221, %s222
      %p231 = scmp.eq.s32.totalorder %s29, 0
      %p232 = por %p230, %p231
      %p233 = scmp.ne.s32.totalorder %s221, %s222
      %p234 = scmp.eq.s32.totalorder %s30, 5
      %p235 = por %p233, %p234
      %p237 = scmp.ne.s32.totalorder %s222, %s236
      %p238 = scmp.eq.s32.totalorder %s30, 0
      %p239 = por %p237, %p238
      %s240 = ssub.s32 %s31, %s43
      %p241 = scmp.eq.s32.totalorder %s240, 0
      %s243 = sadd.s32 %s242, 1
      %s244 = scalar_select %p241, %s242, %s243
      %p247 = pneg %p241
      %p248 = scmp.eq.s32.totalorder %s24, 5
      %p249 = por %p247, %p248
      %p250 = scmp.ne.s32.totalorder %s242, %s245
      %p251 = scmp.eq.s32.totalorder %s24, 0
      %p252 = por %p250, %p251
      %p253 = scmp.ne.s32.totalorder %s242, %s245
      %p254 = scmp.eq.s32.totalorder %s29, 5
      %p255 = por %p253, %p254
      %p256 = scmp.ne.s32.totalorder %s245, %s246
      %p257 = scmp.eq.s32.totalorder %s29, 0
      %p258 = por %p256, %p257
      %p259 = scmp.ne.s32.totalorder %s245, %s246
      %p260 = scmp.eq.s32.totalorder %s30, 5
      %p261 = por %p259, %p260
      %p263 = scmp.ne.s32.totalorder %s246, %s262
      %p264 = scmp.eq.s32.totalorder %s30, 0
      %p265 = por %p263, %p264
      %p266 = scmp.le.s32.totalorder 1, %s24
      %p267 = scmp.lt.s32.totalorder %s24, 7
      %p268 = pnand %p266, %p267
      %p269 = pneg %p268
      // Predicated region
      $region9: #{tpu_custom_call.1} parent=5 // pred_check
        _
      $region10: #{tpu_custom_call.1} parent=5 // pred_check_branch
        %271 = sbr.rel (%p268) target = $region12
      $region11: #{tpu_custom_call.1} parent=5 // pred_region
        %s272 = ssub.s32 %s24, 1
        // Predicated region
        $region13: #{tpu_custom_call.1} parent=11 // pred_check
          %p273 = pneg %p85
        $region14: #{tpu_custom_call.1} parent=11 // pred_check_branch
          %275 = sbr.rel (%p273) target = $region16
        $region15: #{tpu_custom_call.1} parent=11 // pred_region
          %s277 = ssub.s32 1024, 1024
          %278 = vsyncadd [#allocation7], %s277
          %s279 = sshll.u32 [#allocation6], 4
          %s280 = int_to_ptr.vmem [resolvable:$true] %s279
          %285 = dma.hbm_to_vmem [thread:$0]  %s1, 1024, %s280, [#allocation7], 128, 128, 8
        $region16: #{tpu_custom_call.1} parent=11 // pred_fallthru
          _
        // Predicated region
        $region17: #{tpu_custom_call.1} parent=11 // pred_check
          %p286 = pneg %p106
        $region18: #{tpu_custom_call.1} parent=11 // pred_check_branch
          %288 = sbr.rel (%p286) target = $region20
        $region19: #{tpu_custom_call.1} parent=11 // pred_region
          %s290 = ssub.s32 2048, 2048
          %291 = vsyncadd [#allocation7], %s290
          %s292 = sshll.u32 [#allocation8], 4
          %s293 = int_to_ptr.vmem [resolvable:$true] %s292
          %298 = dma.hbm_to_vmem [thread:$0]  %s2, 2048, %s293, [#allocation7], 128, 128, 8
        $region20: #{tpu_custom_call.1} parent=11 // pred_fallthru
          _
        // Predicated region
        $region21: #{tpu_custom_call.1} parent=11 // pred_check
          %p299 = pneg %p127
        $region22: #{tpu_custom_call.1} parent=11 // pred_check_branch
          %301 = sbr.rel (%p299) target = $region24
        $region23: #{tpu_custom_call.1} parent=11 // pred_region
          %s303 = ssub.s32 2048, 2048
          %304 = vsyncadd [#allocation10], %s303
          %s305 = sshll.u32 [#allocation9], 4
          %s306 = int_to_ptr.vmem [resolvable:$true] %s305
          %311 = dma.hbm_to_vmem [thread:$0]  %s3, 2048, %s306, [#allocation10], 128, 128, 8
        $region24: #{tpu_custom_call.1} parent=11 // pred_fallthru
          _
        // Predicated region
        $region25: #{tpu_custom_call.1} parent=11 // pred_check
          %p312 = pneg %p148
        $region26: #{tpu_custom_call.1} parent=11 // pred_check_branch
          %314 = sbr.rel (%p312) target = $region28
        $region27: #{tpu_custom_call.1} parent=11 // pred_region
          _
        $region28: #{tpu_custom_call.1} parent=11 // pred_fallthru
          _
        // Predicated region
        $region29: #{tpu_custom_call.1} parent=11 // pred_check
          %p315 = pneg %p169
        $region30: #{tpu_custom_call.1} parent=11 // pred_check_branch
          %317 = sbr.rel (%p315) target = $region32
        $region31: #{tpu_custom_call.1} parent=11 // pred_region
          %s319 = ssub.s32 2048, 2048
          %320 = vsyncadd [#allocation10], %s319
          %s321 = sshll.u32 [#allocation11], 4
          %s322 = int_to_ptr.vmem [resolvable:$true] %s321
          %327 = dma.hbm_to_vmem [thread:$0]  %s5, 2048, %s322, [#allocation10], 128, 128, 8
        $region32: #{tpu_custom_call.1} parent=11 // pred_fallthru
          _
        // Predicated region
        $region33: #{tpu_custom_call.1} parent=11 // pred_check
          %p328 = pneg %p190
        $region34: #{tpu_custom_call.1} parent=11 // pred_check_branch
          %330 = sbr.rel (%p328) target = $region36
        $region35: #{tpu_custom_call.1} parent=11 // pred_region
          _
        $region36: #{tpu_custom_call.1} parent=11 // pred_fallthru
          _
        // Predicated region
        $region37: #{tpu_custom_call.1} parent=11 // pred_check
          %p331 = pneg %p211
        $region38: #{tpu_custom_call.1} parent=11 // pred_check_branch
          %333 = sbr.rel (%p331) target = $region40
        $region39: #{tpu_custom_call.1} parent=11 // pred_region
          %s335 = ssub.s32 2048, 2048
          %336 = vsyncadd [#allocation13], %s335
          %s337 = sshll.u32 [#allocation12], 4
          %s338 = int_to_ptr.vmem [resolvable:$true] %s337
          %343 = dma.hbm_to_vmem [thread:$0]  %s7, 2048, %s338, [#allocation13], 128, 128, 8
        $region40: #{tpu_custom_call.1} parent=11 // pred_fallthru
          _
        // Predicated region
        $region41: #{tpu_custom_call.1} parent=11 // pred_check
          %p344 = pneg %p232
        $region42: #{tpu_custom_call.1} parent=11 // pred_check_branch
          %346 = sbr.rel (%p344) target = $region44
        $region43: #{tpu_custom_call.1} parent=11 // pred_region
          _
        $region44: #{tpu_custom_call.1} parent=11 // pred_fallthru
          _
      $region12: #{tpu_custom_call.1} parent=5 // pred_fallthru
        _
      %p347 = scmp.lt.s32.totalorder %s24, 6
      // Predicated region
      $region45: #{tpu_custom_call.1} parent=5 // pred_check
        %p348 = pneg %p347
      $region46: #{tpu_custom_call.1} parent=5 // pred_check_branch
        %350 = sbr.rel (%p348) target = $region48
      $region47: #{tpu_custom_call.1} parent=5 // pred_region
        // Predicated region
        $region49: #{tpu_custom_call.1} parent=47 // pred_check
          %p351 = pneg %p58
        $region50: #{tpu_custom_call.1} parent=47 // pred_check_branch
          %353 = sbr.rel (%p351) target = $region52
        $region51: #{tpu_custom_call.1} parent=47 // pred_region
          #allocation16 [shape = 'u32[6]{0}', space=smem, size = 0x18, scoped, tag = 'DMA stride descriptor']
          %s354 = sand.u32 %s48, 1
          %s355 = scalar_lea.sflag [#allocation4], %s354
          %s356 = sand.u32 %s48, 1
          %s357 = smul.addr %s356, 128
          %s358 = scalar_lea.vmem [#allocation3], %s357
          %s359 = smul.u32 8, %s31
          %s360 = smul.u32 2, %s32
          %s361 = ssub.s32 10, %s359
          %p362 = scmp.lt.s32.totalorder %s361, 8
          %s363 = scalar_select %p362, %s361, 8
          %s364 = smul.u32 128, %s363
          %s365 = smul.u32 %s364, 2
          %s367 = ssub.s32 2048, %s365
          %368 = vsyncadd %s355, %s367
          %p369 = scmp.ne.s32.totalorder 0, %s365
          %s370 = smul.addr %s359, 6
          %s371 = sadd.s32 %s360, %s370
          %s372 = smul.addr %s371, 128
          %s373 = scalar_lea.hbm %s0, %s372
          %s374 = smul.u32 16, %s363
          %s376 = sshll.u32 1, 14
          %s377 = sxor.u32 4294967295, %s376
          %s379 = sld [smem:[#allocation0]]
          %s380 = sadd.s32 2, %s379
          %s382 = sshll.u32 7, 26
          %s383 = sxor.u32 4294967295, %s382
          %s384 = sand.u32 0, %s383
          %s385 = sshll.u32 %s380, 26
          %s386 = sor.u32 %s384, %s385
          %s387 = sshll.u32 %s358, 4
          %s388 = int_to_ptr.vmem [resolvable:$true] %s387
          %s389 = sshll.u32 %s374, 4
          %394 = sst [smem:[#allocation16]] 768
          %s395 = scalar_lea.smem [#allocation16], 1
          %396 = sst [smem:[%s395]] 256
          %s397 = scalar_lea.smem [#allocation16], 2
          %398 = sst [smem:[%s397]] 2
          %s399 = scalar_lea.smem [#allocation16], 3
          %400 = sst [smem:[%s399]] 128
          %s401 = scalar_lea.smem [#allocation16], 4
          %402 = sst [smem:[%s401]] 128
          %s403 = scalar_lea.smem [#allocation16], 5
          %404 = sst [smem:[%s403]] 8
          %406 = dma.general (%p369), %s373, %s389, %s388, %s355, [#allocation15], [#allocation16], %s386, 0
        $region52: #{tpu_custom_call.1} parent=47 // pred_fallthru
          _
      $region48: #{tpu_custom_call.1} parent=5 // pred_fallthru
        _
      %p407 = scmp.le.s32.totalorder 1, %s24
      %p408 = scmp.lt.s32.totalorder %s24, 7
      %p409 = pnand %p407, %p408
      %p410 = pneg %p409
      // Predicated region
      $region53: #{tpu_custom_call.1} parent=5 // pred_check
        _
      $region54: #{tpu_custom_call.1} parent=5 // pred_check_branch
        %412 = sbr.rel (%p409) target = $region56
      $region55: #{tpu_custom_call.1} parent=5 // pred_region
        %s413 = ssub.s32 %s24, 1
        %s414 = sand.u32 %s51, 1
        %s415 = scalar_lea.sflag [#allocation4], %s414
        %s416 = sand.u32 %s51, 1
        %s417 = smul.addr %s416, 128
        %s418 = scalar_lea.vmem [#allocation3], %s417
        // Predicated region
        $region57: #{tpu_custom_call.1} parent=55 // pred_check
          %p419 = pneg %p64
        $region58: #{tpu_custom_call.1} parent=55 // pred_check_branch
          %421 = sbr.rel (%p419) target = $region60
        $region59: #{tpu_custom_call.1} parent=55 // pred_region
          %422 = dma.done %s415, 2048
        $region60: #{tpu_custom_call.1} parent=55 // pred_fallthru
          _
        // Predicated region
        $region61: #{tpu_custom_call.1} parent=55 // pred_check
          %p423 = pneg %p85
        $region62: #{tpu_custom_call.1} parent=55 // pred_check_branch
          %425 = sbr.rel (%p423) target = $region64
        $region63: #{tpu_custom_call.1} parent=55 // pred_region
          %426 = dma.done [#allocation7], 1024
        $region64: #{tpu_custom_call.1} parent=55 // pred_fallthru
          _
        // Predicated region
        $region65: #{tpu_custom_call.1} parent=55 // pred_check
          %p427 = pneg %p106
        $region66: #{tpu_custom_call.1} parent=55 // pred_check_branch
          %429 = sbr.rel (%p427) target = $region68
        $region67: #{tpu_custom_call.1} parent=55 // pred_region
          %430 = dma.done [#allocation7], 2048
        $region68: #{tpu_custom_call.1} parent=55 // pred_fallthru
          _
        // Predicated region
        $region69: #{tpu_custom_call.1} parent=55 // pred_check
          %p431 = pneg %p127
        $region70: #{tpu_custom_call.1} parent=55 // pred_check_branch
          %433 = sbr.rel (%p431) target = $region72
        $region71: #{tpu_custom_call.1} parent=55 // pred_region
          %434 = dma.done [#allocation10], 2048
        $region72: #{tpu_custom_call.1} parent=55 // pred_fallthru
          _
        // Predicated region
        $region73: #{tpu_custom_call.1} parent=55 // pred_check
          %p435 = pneg %p169
        $region74: #{tpu_custom_call.1} parent=55 // pred_check_branch
          %437 = sbr.rel (%p435) target = $region76
        $region75: #{tpu_custom_call.1} parent=55 // pred_region
          %438 = dma.done [#allocation10], 2048
        $region76: #{tpu_custom_call.1} parent=55 // pred_fallthru
          _
        // Predicated region
        $region77: #{tpu_custom_call.1} parent=55 // pred_check
          %p439 = pneg %p211
        $region78: #{tpu_custom_call.1} parent=55 // pred_check_branch
          %441 = sbr.rel (%p439) target = $region80
        $region79: #{tpu_custom_call.1} parent=55 // pred_region
          %442 = dma.done [#allocation13], 2048
        $region80: #{tpu_custom_call.1} parent=55 // pred_fallthru
          _
        %s443 = sand.u32 %s51, 1
        %s444 = scalar_lea.sflag [#allocation4], %s443
        %s445 = sand.u32 %s51, 1
        %s446 = smul.addr %s445, 128
        %s447 = scalar_lea.vmem [#allocation3], %s446
        %p448 = pneg %p64
        %p449 = pneg %p61
        %p450 = pneg %p85
        %p451 = pneg %p82
        %p452 = pneg %p106
        %p453 = pneg %p103
        %p454 = pneg %p127
        %p455 = pneg %p124
        %p456 = pneg %p148
        %p457 = pneg %p145
        %p458 = pneg %p169
        %p459 = pneg %p166
        %p460 = pneg %p190
        %p461 = pneg %p187
        %p462 = pneg %p211
        %p463 = pneg %p208
        %p464 = pneg %p232
        %p465 = pneg %p229
        %p466 = pneg %p258
        %p467 = pneg %p255
        %s468 = sand.u32 %s245, 1
        %s469 = scalar_lea.sflag [#allocation5], %s468
        %s470 = sand.u32 %s245, 1
        %s471 = smul.addr %s470, 8
        %s472 = scalar_lea.vmem [#allocation14], %s471
        %s473 = smul.u32 8, %s33
        %s474 = smul.u32 2, %s34
        %s475 = ssub.s32 10, %s473
        %p476 = scmp.lt.s32.totalorder %s475, 8
        %s477 = scalar_select %p476, %s475, 8
        %s478 = smul.u32 128, %s477
        %s479 = smul.u32 %s478, 2
        %p480 = scmp.eq.s32.totalorder %s34, 0
        // Predicated region
        $region81: #{tpu_custom_call.1} parent=55 // pred_check
          %p481 = pneg %p480
        $region82: #{tpu_custom_call.1} parent=55 // pred_check_branch
          %483 = sbr.rel (%p481) target = $region84
        $region83: #{tpu_custom_call.1} parent=55 // pred_region
          %v484 = vld [vmem:[%s418] sm:$0x3]
          %v485 = vld [vmem:[%s418 + $0x10] sm:$0x3]
          %v486 = vld [vmem:[%s418 + $0x20] sm:$0x3]
          %v487 = vld [vmem:[%s418 + $0x30] sm:$0x3]
          %v488 = vld [vmem:[%s418 + $0x40] sm:$0x3]
          %v489 = vld [vmem:[%s418 + $0x50] sm:$0x3]
          %v490 = vld [vmem:[%s418 + $0x60] sm:$0x3]
          %v491 = vld [vmem:[%s418 + $0x70] sm:$0x3]
          %v492 = vcombine.low %v484, %v486
          %v494 = vunpack.c.l.s4 1983009808
          %v495 = vunpack.c.0.s8 %v494
          %v496 = vlaneseq
          %v497 = vshrl.u32 %v496, 7
          %v498 = vsub.s32 %v495, %v497
          %v499 = vrot.slane %v492, %v498
          %v500 = vcombine.low %v485, %v487
          %v502 = vunpack.c.l.s4 1983009808
          %v503 = vunpack.c.0.s8 %v502
          %v504 = vlaneseq
          %v505 = vshrl.u32 %v504, 7
          %v506 = vsub.s32 %v503, %v505
          %v507 = vrot.slane %v500, %v506
          %v508 = vcombine.low %v488, %v490
          %v510 = vunpack.c.l.s4 1983009808
          %v511 = vunpack.c.0.s8 %v510
          %v512 = vlaneseq
          %v513 = vshrl.u32 %v512, 7
          %v514 = vsub.s32 %v511, %v513
          %v515 = vrot.slane %v508, %v514
          %v516 = vcombine.low %v489, %v491
          %v518 = vunpack.c.l.s4 1983009808
          %v519 = vunpack.c.0.s8 %v518
          %v520 = vlaneseq
          %v521 = vshrl.u32 %v520, 7
          %v522 = vsub.s32 %v519, %v521
          %v523 = vrot.slane %v516, %v522
          %v524 = vcombine.low %v499, %v507
          %v526 = vunpack.c.l.s4 1934713408
          %v527 = vunpack.c.0.s8 %v526
          %v528 = vlaneseq
          %v529 = vshrl.u32 %v528, 7
          %v530 = vsub.s32 %v527, %v529
          %v531 = vrot.slane %v524, %v530
          %v532 = vcombine.low %v515, %v523
          %v534 = vunpack.c.l.s4 1934713408
          %v535 = vunpack.c.0.s8 %v534
          %v536 = vlaneseq
          %v537 = vshrl.u32 %v536, 7
          %v538 = vsub.s32 %v535, %v537
          %v539 = vrot.slane %v532, %v538
          %v540 = vcombine.low %v531, %v539
          %v541 = vcombine.high %v531, %v539
          %543 = vrot.lane.b32.xlu0 %v541, 64
          %v544 = vpop.permute.xlu0 %543
          %vm546 = vcmask 523264
          %v547 = vsel %vm546, %v540, %v544
          %v548 = vld [vmem:[#allocation8] sm:$0xff]
          %v549 = vld [vmem:[#allocation8 + $0x8] sm:$0xff]
          %v550 = vld [vmem:[#allocation8 + $0x10] sm:$0xff]
          %v551 = vld [vmem:[#allocation8 + $0x18] sm:$0xff]
          %v552 = vld [vmem:[#allocation8 + $0x20] sm:$0xff]
          %v553 = vld [vmem:[#allocation8 + $0x28] sm:$0xff]
          %v554 = vld [vmem:[#allocation8 + $0x30] sm:$0xff]
          %v555 = vld [vmem:[#allocation8 + $0x38] sm:$0xff]
          %v556 = vld [vmem:[#allocation8 + $0x40] sm:$0xff]
          %v557 = vld [vmem:[#allocation8 + $0x48] sm:$0xff]
          %v558 = vld [vmem:[#allocation8 + $0x50] sm:$0xff]
          %v559 = vld [vmem:[#allocation8 + $0x58] sm:$0xff]
          %v560 = vld [vmem:[#allocation8 + $0x60] sm:$0xff]
          %v561 = vld [vmem:[#allocation8 + $0x68] sm:$0xff]
          %v562 = vld [vmem:[#allocation8 + $0x70] sm:$0xff]
          %v563 = vld [vmem:[#allocation8 + $0x78] sm:$0xff]
          %564 = vmatprep.subr.mxu0 0.0
          %565 = vmatpush1.msra.mxu0 %v548
          %566 = vmatprep.subr.mxu0 0.0
          %567 = vmatpush1.msra.mxu0 %v549
          %568 = vmatprep.subr.mxu0 0.0
          %569 = vmatpush1.msra.mxu0 %v550
          %570 = vmatprep.subr.mxu0 0.0
          %571 = vmatpush1.msra.mxu0 %v551
          %572 = vmatprep.subr.mxu0 0.0
          %573 = vmatpush1.msra.mxu0 %v552
          %574 = vmatprep.subr.mxu0 0.0
          %575 = vmatpush1.msra.mxu0 %v553
          %576 = vmatprep.subr.mxu0 0.0
          %577 = vmatpush1.msra.mxu0 %v554
          %578 = vmatprep.subr.mxu0 0.0
          %579 = vmatpush1.msra.mxu0 %v555
          %580 = vmatprep.subr.mxu0 0.0
          %581 = vmatpush1.msra.mxu0 %v556
          %582 = vmatprep.subr.mxu0 0.0
          %583 = vmatpush1.msra.mxu0 %v557
          %584 = vmatprep.subr.mxu0 0.0
          %585 = vmatpush1.msra.mxu0 %v558
          %586 = vmatprep.subr.mxu0 0.0
          %587 = vmatpush1.msra.mxu0 %v559
          %588 = vmatprep.subr.mxu0 0.0
          %589 = vmatpush1.msra.mxu0 %v560
          %590 = vmatprep.subr.mxu0 0.0
          %591 = vmatpush1.msra.mxu0 %v561
          %592 = vmatprep.subr.mxu0 0.0
          %593 = vmatpush1.msra.mxu0 %v562
          %594 = vmatprep.subr.mxu0 0.0
          %595 = vmatpush1.msra.mxu0 %v563
          %596 = vmatprep.subr.mxu0 0.0
          %597 = vmatpush1.msra.mxu0 0.0
          %598 = vmatprep.subr.mxu0 0.0
          %599 = vmatpush1.msra.mxu0 0.0
          %600 = vmatprep.subr.mxu0 0.0
          %601 = vmatpush1.msra.mxu0 0.0
          %602 = vmatprep.subr.mxu0 0.0
          %603 = vmatpush1.msra.mxu0 0.0
          %604 = vmatprep.subr.mxu0 0.0
          %605 = vmatpush1.msra.mxu0 0.0
          %606 = vmatprep.subr.mxu0 0.0
          %607 = vmatpush1.msra.mxu0 0.0
          %608 = vmatprep.subr.mxu0 0.0
          %609 = vmatpush1.msra.mxu0 0.0
          %610 = vmatprep.subr.mxu0 0.0
          %611 = vmatpush1.msra.mxu0 0.0
          %612 = vmatprep.subr.mxu0 0.0
          %613 = vmatpush1.msra.mxu0 0.0
          %614 = vmatprep.subr.mxu0 0.0
          %615 = vmatpush1.msra.mxu0 0.0
          %616 = vmatprep.subr.mxu0 0.0
          %617 = vmatpush1.msra.mxu0 0.0
          %618 = vmatprep.subr.mxu0 0.0
          %619 = vmatpush1.msra.mxu0 0.0
          %620 = vmatprep.subr.mxu0 0.0
          %621 = vmatpush1.msra.mxu0 0.0
          %622 = vmatprep.subr.mxu0 0.0
          %623 = vmatpush1.msra.mxu0 0.0
          %624 = vmatprep.subr.mxu0 0.0
          %625 = vmatpush1.msra.mxu0 0.0
          %626 = vmatprep.subr.mxu0 0.0
          %627 = vmatpush1.msra.mxu0 0.0
          %628 = vmatprep.mubr.f32.mxu0 0.0
          %629 = vmatmul.mubr.f32.gmra.mrb[0].mxu0 %v547
          %v630 = vpop.f32.mrb[0].mxu0
          %v631 = vadd.f32 0.0, %v630
          %v632 = vpop.f32.mrb[0].mxu0
          %633 = vdwg.mxu0
          %v634 = vsub.f32 0.0, %v631
          %635 = vst [vmem:[#allocation2] sm:$0xff] %v634
        $region84: #{tpu_custom_call.1} parent=55 // pred_fallthru
          _
        %v636 = vld [vmem:[%s418] sm:$0xff]
        %v637 = vld [vmem:[%s418 + $0x8] sm:$0xff]
        %v638 = vld [vmem:[%s418 + $0x10] sm:$0xff]
        %v639 = vld [vmem:[%s418 + $0x18] sm:$0xff]
        %v640 = vld [vmem:[%s418 + $0x20] sm:$0xff]
        %v641 = vld [vmem:[%s418 + $0x28] sm:$0xff]
        %v642 = vld [vmem:[%s418 + $0x30] sm:$0xff]
        %v643 = vld [vmem:[%s418 + $0x38] sm:$0xff]
        %v644 = vld [vmem:[%s418 + $0x40] sm:$0xff]
        %v645 = vld [vmem:[%s418 + $0x48] sm:$0xff]
        %v646 = vld [vmem:[%s418 + $0x50] sm:$0xff]
        %v647 = vld [vmem:[%s418 + $0x58] sm:$0xff]
        %v648 = vld [vmem:[%s418 + $0x60] sm:$0xff]
        %v649 = vld [vmem:[%s418 + $0x68] sm:$0xff]
        %v650 = vld [vmem:[%s418 + $0x70] sm:$0xff]
        %v651 = vld [vmem:[%s418 + $0x78] sm:$0xff]
        %vm652 = vcmask 523264
        %v653 = vsel %vm652, %v636, 0.0
        %v654 = vsel %vm652, %v637, 0.0
        %v655 = vadd.f32 %v653, %v654
        %v656 = vrot.slane %v655, 4
        %v657 = vadd.f32 %v655, %v656
        %v658 = vrot.slane %v657, 2
        %v659 = vadd.f32 %v657, %v658
        %v660 = vrot.slane %v659, 1
        %v661 = vadd.f32 %v659, %v660
        %v662 = vsel %vm652, %v638, 0.0
        %v663 = vsel %vm652, %v639, 0.0
        %v664 = vadd.f32 %v662, %v663
        %v665 = vrot.slane %v664, 4
        %v666 = vadd.f32 %v664, %v665
        %v667 = vrot.slane %v666, 2
        %v668 = vadd.f32 %v666, %v667
        %v669 = vrot.slane %v668, 1
        %v670 = vadd.f32 %v668, %v669
        %v671 = vsel %vm652, %v640, 0.0
        %v672 = vsel %vm652, %v641, 0.0
        %v673 = vadd.f32 %v671, %v672
        %v674 = vrot.slane %v673, 4
        %v675 = vadd.f32 %v673, %v674
        %v676 = vrot.slane %v675, 2
        %v677 = vadd.f32 %v675, %v676
        %v678 = vrot.slane %v677, 1
        %v679 = vadd.f32 %v677, %v678
        %v680 = vsel %vm652, %v642, 0.0
        %v681 = vsel %vm652, %v643, 0.0
        %v682 = vadd.f32 %v680, %v681
        %v683 = vrot.slane %v682, 4
        %v684 = vadd.f32 %v682, %v683
        %v685 = vrot.slane %v684, 2
        %v686 = vadd.f32 %v684, %v685
        %v687 = vrot.slane %v686, 1
        %v688 = vadd.f32 %v686, %v687
        %v689 = vsel %vm652, %v644, 0.0
        %v690 = vsel %vm652, %v645, 0.0
        %v691 = vadd.f32 %v689, %v690
        %v692 = vrot.slane %v691, 4
        %v693 = vadd.f32 %v691, %v692
        %v694 = vrot.slane %v693, 2
        %v695 = vadd.f32 %v693, %v694
        %v696 = vrot.slane %v695, 1
        %v697 = vadd.f32 %v695, %v696
        %v698 = vsel %vm652, %v646, 0.0
        %v699 = vsel %vm652, %v647, 0.0
        %v700 = vadd.f32 %v698, %v699
        %v701 = vrot.slane %v700, 4
        %v702 = vadd.f32 %v700, %v701
        %v703 = vrot.slane %v702, 2
        %v704 = vadd.f32 %v702, %v703
        %v705 = vrot.slane %v704, 1
        %v706 = vadd.f32 %v704, %v705
        %v707 = vsel %vm652, %v648, 0.0
        %v708 = vsel %vm652, %v649, 0.0
        %v709 = vadd.f32 %v707, %v708
        %v710 = vrot.slane %v709, 4
        %v711 = vadd.f32 %v709, %v710
        %v712 = vrot.slane %v711, 2
        %v713 = vadd.f32 %v711, %v712
        %v714 = vrot.slane %v713, 1
        %v715 = vadd.f32 %v713, %v714
        %v716 = vsel %vm652, %v650, 0.0
        %v717 = vsel %vm652, %v651, 0.0
        %v718 = vadd.f32 %v716, %v717
        %v719 = vrot.slane %v718, 4
        %v720 = vadd.f32 %v718, %v719
        %v721 = vrot.slane %v720, 2
        %v722 = vadd.f32 %v720, %v721
        %v723 = vrot.slane %v722, 1
        %v724 = vadd.f32 %v722, %v723
        %v725 = vadd.f32 %v661, 0.0
        %v726 = vadd.f32 %v670, 0.0
        %v727 = vadd.f32 %v679, 0.0
        %v728 = vadd.f32 %v688, 0.0
        %v729 = vadd.f32 %v697, 0.0
        %v730 = vadd.f32 %v706, 0.0
        %v731 = vadd.f32 %v715, 0.0
        %v732 = vadd.f32 %v724, 0.0
        %v733 = vld [vmem:[#allocation2] sm:$0xff]
        %v734 = vld [vmem:[#allocation6] sm:$0xff]
        %v735 = vld [vmem:[#allocation6 + $0x8] sm:$0xff]
        %v736 = vld [vmem:[#allocation6 + $0x10] sm:$0xff]
        %v737 = vld [vmem:[#allocation6 + $0x18] sm:$0xff]
        %v738 = vld [vmem:[#allocation6 + $0x20] sm:$0xff]
        %v739 = vld [vmem:[#allocation6 + $0x28] sm:$0xff]
        %v740 = vld [vmem:[#allocation6 + $0x30] sm:$0xff]
        %v741 = vld [vmem:[#allocation6 + $0x38] sm:$0xff]
        %vm750 = vcmask 1041409
        %v751 = vsel %vm750, %v726, %v725
        %vm752 = vcmask 1042434
        %v753 = vsel %vm752, %v727, %v751
        %vm754 = vcmask 1043459
        %v755 = vsel %vm754, %v728, %v753
        %vm756 = vcmask 1044484
        %v757 = vsel %vm756, %v729, %v755
        %vm758 = vcmask 1045509
        %v759 = vsel %vm758, %v730, %v757
        %vm760 = vcmask 1046534
        %v761 = vsel %vm760, %v731, %v759
        %vm762 = vcmask 1047559
        %v763 = vsel %vm762, %v732, %v761
        %v764 = vsel %vm652, %v763, 0
        %766 = vmatprep.subr.mxu0 0.0
        %767 = vmatpush1.msra.mxu0 %v734
        %768 = vmatprep.subr.mxu0 0.0
        %769 = vmatpush1.msra.mxu0 %v735
        %770 = vmatprep.subr.mxu0 0.0
        %771 = vmatpush1.msra.mxu0 %v736
        %772 = vmatprep.subr.mxu0 0.0
        %773 = vmatpush1.msra.mxu0 %v737
        %774 = vmatprep.subr.mxu0 0.0
        %775 = vmatpush1.msra.mxu0 %v738
        %776 = vmatprep.subr.mxu0 0.0
        %777 = vmatpush1.msra.mxu0 %v739
        %778 = vmatprep.subr.mxu0 0.0
        %779 = vmatpush1.msra.mxu0 %v740
        %780 = vmatprep.subr.mxu0 0.0
        %781 = vmatpush1.msra.mxu0 %v741
        %782 = vmatprep.subr.mxu0 0.0
        %783 = vmatpush1.msra.mxu0 0.0
        %784 = vmatprep.subr.mxu0 0.0
        %785 = vmatpush1.msra.mxu0 0.0
        %786 = vmatprep.subr.mxu0 0.0
        %787 = vmatpush1.msra.mxu0 0.0
        %788 = vmatprep.subr.mxu0 0.0
        %789 = vmatpush1.msra.mxu0 0.0
        %790 = vmatprep.subr.mxu0 0.0
        %791 = vmatpush1.msra.mxu0 0.0
        %792 = vmatprep.subr.mxu0 0.0
        %793 = vmatpush1.msra.mxu0 0.0
        %794 = vmatprep.subr.mxu0 0.0
        %795 = vmatpush1.msra.mxu0 0.0
        %796 = vmatprep.subr.mxu0 0.0
        %797 = vmatpush1.msra.mxu0 0.0
        %798 = vmatprep.subr.mxu0 0.0
        %799 = vmatpush1.msra.mxu0 0.0
        %800 = vmatprep.subr.mxu0 0.0
        %801 = vmatpush1.msra.mxu0 0.0
        %802 = vmatprep.subr.mxu0 0.0
        %803 = vmatpush1.msra.mxu0 0.0
        %804 = vmatprep.subr.mxu0 0.0
        %805 = vmatpush1.msra.mxu0 0.0
        %806 = vmatprep.subr.mxu0 0.0
        %807 = vmatpush1.msra.mxu0 0.0
        %808 = vmatprep.subr.mxu0 0.0
        %809 = vmatpush1.msra.mxu0 0.0
        %810 = vmatprep.subr.mxu0 0.0
        %811 = vmatpush1.msra.mxu0 0.0
        %812 = vmatprep.subr.mxu0 0.0
        %813 = vmatpush1.msra.mxu0 0.0
        %814 = vmatprep.subr.mxu0 0.0
        %815 = vmatpush1.msra.mxu0 0.0
        %816 = vmatprep.subr.mxu0 0.0
        %817 = vmatpush1.msra.mxu0 0.0
        %818 = vmatprep.subr.mxu0 0.0
        %819 = vmatpush1.msra.mxu0 0.0
        %820 = vmatprep.subr.mxu0 0.0
        %821 = vmatpush1.msra.mxu0 0.0
        %822 = vmatprep.subr.mxu0 0.0
        %823 = vmatpush1.msra.mxu0 0.0
        %824 = vmatprep.subr.mxu0 0.0
        %825 = vmatpush1.msra.mxu0 0.0
        %826 = vmatprep.subr.mxu0 0.0
        %827 = vmatpush1.msra.mxu0 0.0
        %828 = vmatprep.subr.mxu0 0.0
        %829 = vmatpush1.msra.mxu0 0.0
        %830 = vmatprep.mubr.f32.mxu0 0.0
        %831 = vmatmul.mubr.f32.gmra.mrb[0].mxu0 %v764
        %v832 = vpop.f32.mrb[0].mxu0
        %v833 = vadd.f32 0.0, %v832
        %v834 = vpop.f32.mrb[0].mxu0
        %835 = vdwg.mxu0
        %v836 = vadd.f32 %v733, %v833
        %837 = vst [vmem:[#allocation2] sm:$0xff] %v836
        %p838 = scmp.eq.s32.totalorder %s34, 2
        // Predicated region
        $region85: #{tpu_custom_call.1} parent=55 // pred_check
          %p839 = pneg %p838
        $region86: #{tpu_custom_call.1} parent=55 // pred_check_branch
          %841 = sbr.rel (%p839) target = $region88
        $region87: #{tpu_custom_call.1} parent=55 // pred_region
          %v842 = vld [vmem:[%s418 + $0xe] sm:$0x3]
          %v843 = vld [vmem:[%s418 + $0x1e] sm:$0x3]
          %v844 = vld [vmem:[%s418 + $0x2e] sm:$0x3]
          %v845 = vld [vmem:[%s418 + $0x3e] sm:$0x3]
          %v846 = vld [vmem:[%s418 + $0x4e] sm:$0x3]
          %v847 = vld [vmem:[%s418 + $0x5e] sm:$0x3]
          %v848 = vld [vmem:[%s418 + $0x6e] sm:$0x3]
          %v849 = vld [vmem:[%s418 + $0x7e] sm:$0x3]
          %v850 = vcombine.low %v842, %v844
          %v852 = vunpack.c.l.s4 1983009808
          %v853 = vunpack.c.0.s8 %v852
          %v854 = vlaneseq
          %v855 = vshrl.u32 %v854, 7
          %v856 = vsub.s32 %v853, %v855
          %v857 = vrot.slane %v850, %v856
          %v858 = vcombine.low %v843, %v845
          %v860 = vunpack.c.l.s4 1983009808
          %v861 = vunpack.c.0.s8 %v860
          %v862 = vlaneseq
          %v863 = vshrl.u32 %v862, 7
          %v864 = vsub.s32 %v861, %v863
          %v865 = vrot.slane %v858, %v864
          %v866 = vcombine.low %v846, %v848
          %v868 = vunpack.c.l.s4 1983009808
          %v869 = vunpack.c.0.s8 %v868
          %v870 = vlaneseq
          %v871 = vshrl.u32 %v870, 7
          %v872 = vsub.s32 %v869, %v871
          %v873 = vrot.slane %v866, %v872
          %v874 = vcombine.low %v847, %v849
          %v876 = vunpack.c.l.s4 1983009808
          %v877 = vunpack.c.0.s8 %v876
          %v878 = vlaneseq
          %v879 = vshrl.u32 %v878, 7
          %v880 = vsub.s32 %v877, %v879
          %v881 = vrot.slane %v874, %v880
          %v882 = vcombine.low %v857, %v865
          %v884 = vunpack.c.l.s4 1934713408
          %v885 = vunpack.c.0.s8 %v884
          %v886 = vlaneseq
          %v887 = vshrl.u32 %v886, 7
          %v888 = vsub.s32 %v885, %v887
          %v889 = vrot.slane %v882, %v888
          %v890 = vcombine.low %v873, %v881
          %v892 = vunpack.c.l.s4 1934713408
          %v893 = vunpack.c.0.s8 %v892
          %v894 = vlaneseq
          %v895 = vshrl.u32 %v894, 7
          %v896 = vsub.s32 %v893, %v895
          %v897 = vrot.slane %v890, %v896
          %v898 = vcombine.low %v889, %v897
          %v899 = vcombine.high %v889, %v897
          %901 = vrot.lane.b32.xlu0 %v899, 64
          %v902 = vpop.permute.xlu0 %901
          %v904 = vsel %vm652, %v898, %v902
          %v905 = vld [vmem:[#allocation2] sm:$0xff]
          %v906 = vld [vmem:[#allocation9] sm:$0xff]
          %v907 = vld [vmem:[#allocation9 + $0x8] sm:$0xff]
          %v908 = vld [vmem:[#allocation9 + $0x10] sm:$0xff]
          %v909 = vld [vmem:[#allocation9 + $0x18] sm:$0xff]
          %v910 = vld [vmem:[#allocation9 + $0x20] sm:$0xff]
          %v911 = vld [vmem:[#allocation9 + $0x28] sm:$0xff]
          %v912 = vld [vmem:[#allocation9 + $0x30] sm:$0xff]
          %v913 = vld [vmem:[#allocation9 + $0x38] sm:$0xff]
          %v914 = vld [vmem:[#allocation9 + $0x40] sm:$0xff]
          %v915 = vld [vmem:[#allocation9 + $0x48] sm:$0xff]
          %v916 = vld [vmem:[#allocation9 + $0x50] sm:$0xff]
          %v917 = vld [vmem:[#allocation9 + $0x58] sm:$0xff]
          %v918 = vld [vmem:[#allocation9 + $0x60] sm:$0xff]
          %v919 = vld [vmem:[#allocation9 + $0x68] sm:$0xff]
          %v920 = vld [vmem:[#allocation9 + $0x70] sm:$0xff]
          %v921 = vld [vmem:[#allocation9 + $0x78] sm:$0xff]
          %922 = vmatprep.subr.mxu0 0.0
          %923 = vmatpush1.msra.mxu0 %v906
          %924 = vmatprep.subr.mxu0 0.0
          %925 = vmatpush1.msra.mxu0 %v907
          %926 = vmatprep.subr.mxu0 0.0
          %927 = vmatpush1.msra.mxu0 %v908
          %928 = vmatprep.subr.mxu0 0.0
          %929 = vmatpush1.msra.mxu0 %v909
          %930 = vmatprep.subr.mxu0 0.0
          %931 = vmatpush1.msra.mxu0 %v910
          %932 = vmatprep.subr.mxu0 0.0
          %933 = vmatpush1.msra.mxu0 %v911
          %934 = vmatprep.subr.mxu0 0.0
          %935 = vmatpush1.msra.mxu0 %v912
          %936 = vmatprep.subr.mxu0 0.0
          %937 = vmatpush1.msra.mxu0 %v913
          %938 = vmatprep.subr.mxu0 0.0
          %939 = vmatpush1.msra.mxu0 %v914
          %940 = vmatprep.subr.mxu0 0.0
          %941 = vmatpush1.msra.mxu0 %v915
          %942 = vmatprep.subr.mxu0 0.0
          %943 = vmatpush1.msra.mxu0 %v916
          %944 = vmatprep.subr.mxu0 0.0
          %945 = vmatpush1.msra.mxu0 %v917
          %946 = vmatprep.subr.mxu0 0.0
          %947 = vmatpush1.msra.mxu0 %v918
          %948 = vmatprep.subr.mxu0 0.0
          %949 = vmatpush1.msra.mxu0 %v919
          %950 = vmatprep.subr.mxu0 0.0
          %951 = vmatpush1.msra.mxu0 %v920
          %952 = vmatprep.subr.mxu0 0.0
          %953 = vmatpush1.msra.mxu0 %v921
          %954 = vmatprep.subr.mxu0 0.0
          %955 = vmatpush1.msra.mxu0 0.0
          %956 = vmatprep.subr.mxu0 0.0
          %957 = vmatpush1.msra.mxu0 0.0
          %958 = vmatprep.subr.mxu0 0.0
          %959 = vmatpush1.msra.mxu0 0.0
          %960 = vmatprep.subr.mxu0 0.0
          %961 = vmatpush1.msra.mxu0 0.0
          %962 = vmatprep.subr.mxu0 0.0
          %963 = vmatpush1.msra.mxu0 0.0
          %964 = vmatprep.subr.mxu0 0.0
          %965 = vmatpush1.msra.mxu0 0.0
          %966 = vmatprep.subr.mxu0 0.0
          %967 = vmatpush1.msra.mxu0 0.0
          %968 = vmatprep.subr.mxu0 0.0
          %969 = vmatpush1.msra.mxu0 0.0
          %970 = vmatprep.subr.mxu0 0.0
          %971 = vmatpush1.msra.mxu0 0.0
          %972 = vmatprep.subr.mxu0 0.0
          %973 = vmatpush1.msra.mxu0 0.0
          %974 = vmatprep.subr.mxu0 0.0
          %975 = vmatpush1.msra.mxu0 0.0
          %976 = vmatprep.subr.mxu0 0.0
          %977 = vmatpush1.msra.mxu0 0.0
          %978 = vmatprep.subr.mxu0 0.0
          %979 = vmatpush1.msra.mxu0 0.0
          %980 = vmatprep.subr.mxu0 0.0
          %981 = vmatpush1.msra.mxu0 0.0
          %982 = vmatprep.subr.mxu0 0.0
          %983 = vmatpush1.msra.mxu0 0.0
          %984 = vmatprep.subr.mxu0 0.0
          %985 = vmatpush1.msra.mxu0 0.0
          %986 = vmatprep.mubr.f32.mxu0 0.0
          %987 = vmatmul.mubr.f32.gmra.mrb[0].mxu0 %v904
          %v988 = vpop.f32.mrb[0].mxu0
          %v989 = vadd.f32 0.0, %v988
          %v990 = vpop.f32.mrb[0].mxu0
          %991 = vdwg.mxu0
          %v992 = vsub.f32 %v905, %v989
          %v993 = vmul.f32 %v992, 0.02173913
          %v994 = vld [vmem:[%s4] sm:$0x1]
          %v996 = vlaneseq
          %v997 = vshrl.u32 %v996, 7
          %v998 = vsub.s32 0, %v997
          %v999 = vrot.slane %v994, %v998
          %v1001 = vadd.f32 %v993, %v999
          %v1002 = vld [vmem:[#allocation11] sm:$0xff]
          %v1003 = vld [vmem:[#allocation11 + $0x8] sm:$0xff]
          %v1004 = vld [vmem:[#allocation11 + $0x10] sm:$0xff]
          %v1005 = vld [vmem:[#allocation11 + $0x18] sm:$0xff]
          %v1006 = vld [vmem:[#allocation11 + $0x20] sm:$0xff]
          %v1007 = vld [vmem:[#allocation11 + $0x28] sm:$0xff]
          %v1008 = vld [vmem:[#allocation11 + $0x30] sm:$0xff]
          %v1009 = vld [vmem:[#allocation11 + $0x38] sm:$0xff]
          %v1010 = vld [vmem:[#allocation11 + $0x40] sm:$0xff]
          %v1011 = vld [vmem:[#allocation11 + $0x48] sm:$0xff]
          %v1012 = vld [vmem:[#allocation11 + $0x50] sm:$0xff]
          %v1013 = vld [vmem:[#allocation11 + $0x58] sm:$0xff]
          %v1014 = vld [vmem:[#allocation11 + $0x60] sm:$0xff]
          %v1015 = vld [vmem:[#allocation11 + $0x68] sm:$0xff]
          %v1016 = vld [vmem:[#allocation11 + $0x70] sm:$0xff]
          %v1017 = vld [vmem:[#allocation11 + $0x78] sm:$0xff]
          %v1018 = vld [vmem:[%s6] sm:$0x1]
          %v1020 = vlaneseq
          %v1021 = vshrl.u32 %v1020, 7
          %v1022 = vsub.s32 0, %v1021
          %v1023 = vrot.slane %v1018, %v1022
          %1025 = vmatprep.subr.mxu0 0.0
          %1026 = vmatpush1.msra.mxu0 %v1002
          %1027 = vmatprep.subr.mxu0 0.0
          %1028 = vmatpush1.msra.mxu0 %v1003
          %1029 = vmatprep.subr.mxu0 0.0
          %1030 = vmatpush1.msra.mxu0 %v1004
          %1031 = vmatprep.subr.mxu0 0.0
          %1032 = vmatpush1.msra.mxu0 %v1005
          %1033 = vmatprep.subr.mxu0 0.0
          %1034 = vmatpush1.msra.mxu0 %v1006
          %1035 = vmatprep.subr.mxu0 0.0
          %1036 = vmatpush1.msra.mxu0 %v1007
          %1037 = vmatprep.subr.mxu0 0.0
          %1038 = vmatpush1.msra.mxu0 %v1008
          %1039 = vmatprep.subr.mxu0 0.0
          %1040 = vmatpush1.msra.mxu0 %v1009
          %1041 = vmatprep.subr.mxu0 0.0
          %1042 = vmatpush1.msra.mxu0 %v1010
          %1043 = vmatprep.subr.mxu0 0.0
          %1044 = vmatpush1.msra.mxu0 %v1011
          %1045 = vmatprep.subr.mxu0 0.0
          %1046 = vmatpush1.msra.mxu0 %v1012
          %1047 = vmatprep.subr.mxu0 0.0
          %1048 = vmatpush1.msra.mxu0 %v1013
          %1049 = vmatprep.subr.mxu0 0.0
          %1050 = vmatpush1.msra.mxu0 %v1014
          %1051 = vmatprep.subr.mxu0 0.0
          %1052 = vmatpush1.msra.mxu0 %v1015
          %1053 = vmatprep.subr.mxu0 0.0
          %1054 = vmatpush1.msra.mxu0 %v1016
          %1055 = vmatprep.subr.mxu0 0.0
          %1056 = vmatpush1.msra.mxu0 %v1017
          %1057 = vmatprep.subr.mxu0 0.0
          %1058 = vmatpush1.msra.mxu0 0.0
          %1059 = vmatprep.subr.mxu0 0.0
          %1060 = vmatpush1.msra.mxu0 0.0
          %1061 = vmatprep.subr.mxu0 0.0
          %1062 = vmatpush1.msra.mxu0 0.0
          %1063 = vmatprep.subr.mxu0 0.0
          %1064 = vmatpush1.msra.mxu0 0.0
          %1065 = vmatprep.subr.mxu0 0.0
          %1066 = vmatpush1.msra.mxu0 0.0
          %1067 = vmatprep.subr.mxu0 0.0
          %1068 = vmatpush1.msra.mxu0 0.0
          %1069 = vmatprep.subr.mxu0 0.0
          %1070 = vmatpush1.msra.mxu0 0.0
          %1071 = vmatprep.subr.mxu0 0.0
          %1072 = vmatpush1.msra.mxu0 0.0
          %1073 = vmatprep.subr.mxu0 0.0
          %1074 = vmatpush1.msra.mxu0 0.0
          %1075 = vmatprep.subr.mxu0 0.0
          %1076 = vmatpush1.msra.mxu0 0.0
          %1077 = vmatprep.subr.mxu0 0.0
          %1078 = vmatpush1.msra.mxu0 0.0
          %1079 = vmatprep.subr.mxu0 0.0
          %1080 = vmatpush1.msra.mxu0 0.0
          %1081 = vmatprep.subr.mxu0 0.0
          %1082 = vmatpush1.msra.mxu0 0.0
          %1083 = vmatprep.subr.mxu0 0.0
          %1084 = vmatpush1.msra.mxu0 0.0
          %1085 = vmatprep.subr.mxu0 0.0
          %1086 = vmatpush1.msra.mxu0 0.0
          %1087 = vmatprep.subr.mxu0 0.0
          %1088 = vmatpush1.msra.mxu0 0.0
          %1089 = vmatprep.mubr.f32.mxu0 0.0
          %1090 = vmatmul.mubr.f32.gmra.mrb[0].mxu0 %v1001
          %v1091 = vpop.f32.mrb[0].mxu0
          %v1092 = vadd.f32 %v1023, %v1091
          %v1093 = vpop.f32.mrb[0].mxu0
          %1094 = vdwg.mxu0
          %v1095 = vtanh.pop %v1092
          %v1096 = vld [vmem:[#allocation12] sm:$0xff]
          %v1097 = vld [vmem:[#allocation12 + $0x8] sm:$0xff]
          %v1098 = vld [vmem:[#allocation12 + $0x10] sm:$0xff]
          %v1099 = vld [vmem:[#allocation12 + $0x18] sm:$0xff]
          %v1100 = vld [vmem:[#allocation12 + $0x20] sm:$0xff]
          %v1101 = vld [vmem:[#allocation12 + $0x28] sm:$0xff]
          %v1102 = vld [vmem:[#allocation12 + $0x30] sm:$0xff]
          %v1103 = vld [vmem:[#allocation12 + $0x38] sm:$0xff]
          %v1104 = vld [vmem:[#allocation12 + $0x40] sm:$0xff]
          %v1105 = vld [vmem:[#allocation12 + $0x48] sm:$0xff]
          %v1106 = vld [vmem:[#allocation12 + $0x50] sm:$0xff]
          %v1107 = vld [vmem:[#allocation12 + $0x58] sm:$0xff]
          %v1108 = vld [vmem:[#allocation12 + $0x60] sm:$0xff]
          %v1109 = vld [vmem:[#allocation12 + $0x68] sm:$0xff]
          %v1110 = vld [vmem:[#allocation12 + $0x70] sm:$0xff]
          %v1111 = vld [vmem:[#allocation12 + $0x78] sm:$0xff]
          %v1112 = vld [vmem:[%s8] sm:$0x1]
          %v1114 = vlaneseq
          %v1115 = vshrl.u32 %v1114, 7
          %v1116 = vsub.s32 0, %v1115
          %v1117 = vrot.slane %v1112, %v1116
          %1119 = vmatprep.subr.mxu0 0.0
          %1120 = vmatpush1.msra.mxu0 %v1096
          %1121 = vmatprep.subr.mxu0 0.0
          %1122 = vmatpush1.msra.mxu0 %v1097
          %1123 = vmatprep.subr.mxu0 0.0
          %1124 = vmatpush1.msra.mxu0 %v1098
          %1125 = vmatprep.subr.mxu0 0.0
          %1126 = vmatpush1.msra.mxu0 %v1099
          %1127 = vmatprep.subr.mxu0 0.0
          %1128 = vmatpush1.msra.mxu0 %v1100
          %1129 = vmatprep.subr.mxu0 0.0
          %1130 = vmatpush1.msra.mxu0 %v1101
          %1131 = vmatprep.subr.mxu0 0.0
          %1132 = vmatpush1.msra.mxu0 %v1102
          %1133 = vmatprep.subr.mxu0 0.0
          %1134 = vmatpush1.msra.mxu0 %v1103
          %1135 = vmatprep.subr.mxu0 0.0
          %1136 = vmatpush1.msra.mxu0 %v1104
          %1137 = vmatprep.subr.mxu0 0.0
          %1138 = vmatpush1.msra.mxu0 %v1105
          %1139 = vmatprep.subr.mxu0 0.0
          %1140 = vmatpush1.msra.mxu0 %v1106
          %1141 = vmatprep.subr.mxu0 0.0
          %1142 = vmatpush1.msra.mxu0 %v1107
          %1143 = vmatprep.subr.mxu0 0.0
          %1144 = vmatpush1.msra.mxu0 %v1108
          %1145 = vmatprep.subr.mxu0 0.0
          %1146 = vmatpush1.msra.mxu0 %v1109
          %1147 = vmatprep.subr.mxu0 0.0
          %1148 = vmatpush1.msra.mxu0 %v1110
          %1149 = vmatprep.subr.mxu0 0.0
          %1150 = vmatpush1.msra.mxu0 %v1111
          %1151 = vmatprep.subr.mxu0 0.0
          %1152 = vmatpush1.msra.mxu0 0.0
          %1153 = vmatprep.subr.mxu0 0.0
          %1154 = vmatpush1.msra.mxu0 0.0
          %1155 = vmatprep.subr.mxu0 0.0
          %1156 = vmatpush1.msra.mxu0 0.0
          %1157 = vmatprep.subr.mxu0 0.0
          %1158 = vmatpush1.msra.mxu0 0.0
          %1159 = vmatprep.subr.mxu0 0.0
          %1160 = vmatpush1.msra.mxu0 0.0
          %1161 = vmatprep.subr.mxu0 0.0
          %1162 = vmatpush1.msra.mxu0 0.0
          %1163 = vmatprep.subr.mxu0 0.0
          %1164 = vmatpush1.msra.mxu0 0.0
          %1165 = vmatprep.subr.mxu0 0.0
          %1166 = vmatpush1.msra.mxu0 0.0
          %1167 = vmatprep.subr.mxu0 0.0
          %1168 = vmatpush1.msra.mxu0 0.0
          %1169 = vmatprep.subr.mxu0 0.0
          %1170 = vmatpush1.msra.mxu0 0.0
          %1171 = vmatprep.subr.mxu0 0.0
          %1172 = vmatpush1.msra.mxu0 0.0
          %1173 = vmatprep.subr.mxu0 0.0
          %1174 = vmatpush1.msra.mxu0 0.0
          %1175 = vmatprep.subr.mxu0 0.0
          %1176 = vmatpush1.msra.mxu0 0.0
          %1177 = vmatprep.subr.mxu0 0.0
          %1178 = vmatpush1.msra.mxu0 0.0
          %1179 = vmatprep.subr.mxu0 0.0
          %1180 = vmatpush1.msra.mxu0 0.0
          %1181 = vmatprep.subr.mxu0 0.0
          %1182 = vmatpush1.msra.mxu0 0.0
          %1183 = vmatprep.mubr.f32.mxu0 0.0
          %1184 = vmatmul.mubr.f32.gmra.mrb[0].mxu0 %v1095
          %v1185 = vpop.f32.mrb[0].mxu0
          %v1186 = vadd.f32 %v1117, %v1185
          %v1187 = vpop.f32.mrb[0].mxu0
          %1188 = vdwg.mxu0
          %1189 = vmax.xlane.f32.xlu0 %v1186
          %v1190 = vpop.xlane.xlu0 %1189
          %v1191 = vsub.f32 %v1186, %v1190
          %v1192 = vmul.f32 %v1191, 1.442695
          %v1193 = vpow.pop %v1192
          %1194 = vadd.xlane.f32.xlu0 %v1193
          %v1195 = vpop.xlane.xlu0 %1194
          %v1196 = vrcp.pop %v1195
          %v1197 = vmul.f32 %v1193, %v1196
          %1198 = vst [vmem:[%s472] sm:$0xff] %v1197
        $region88: #{tpu_custom_call.1} parent=55 // pred_fallthru
          _
        %s1199 = sand.u32 %s245, 1
        %s1200 = scalar_lea.sflag [#allocation5], %s1199
        %s1201 = sand.u32 %s245, 1
        %s1202 = smul.addr %s1201, 8
        %s1203 = scalar_lea.vmem [#allocation14], %s1202
        // Predicated region
        $region89: #{tpu_custom_call.1} parent=55 // pred_check
          %p1204 = pneg %p255
        $region90: #{tpu_custom_call.1} parent=55 // pred_check_branch
          %1206 = sbr.rel (%p1204) target = $region92
        $region91: #{tpu_custom_call.1} parent=55 // pred_region
          %s1208 = ssub.s32 128, 128
          %1209 = vsyncadd %s1200, %s1208
          %s1210 = smul.addr %s33, 128
          %s1211 = scalar_lea.hbm %s9, %s1210
          %s1213 = sshll.u32 %s1203, 4
          %s1214 = int_to_ptr.vmem [resolvable:$true] %s1213
          %1216 = dma.vmem_to_hbm [thread:$0]  %s1214, 128, %s1211, %s1200
        $region92: #{tpu_custom_call.1} parent=55 // pred_fallthru
          _
      $region56: #{tpu_custom_call.1} parent=5 // pred_fallthru
        _
      %p1217 = scmp.le.s32.totalorder 2, %s24
      // Predicated region
      $region93: #{tpu_custom_call.1} parent=5 // pred_check
        %p1218 = pneg %p1217
      $region94: #{tpu_custom_call.1} parent=5 // pred_check_branch
        %1220 = sbr.rel (%p1218) target = $region96
      $region95: #{tpu_custom_call.1} parent=5 // pred_region
        %s1221 = ssub.s32 %s24, 2
        // Predicated region
        $region97: #{tpu_custom_call.1} parent=95 // pred_check
          %p1222 = pneg %p261
        $region98: #{tpu_custom_call.1} parent=95 // pred_check_branch
          %1224 = sbr.rel (%p1222) target = $region100
        $region99: #{tpu_custom_call.1} parent=95 // pred_region
          %s1225 = sand.u32 %s246, 1
          %s1226 = scalar_lea.sflag [#allocation5], %s1225
          %s1227 = sand.u32 %s246, 1
          %s1228 = smul.addr %s1227, 8
          %s1229 = scalar_lea.vmem [#allocation14], %s1228
          %1230 = dma.done %s1226, 128
        $region100: #{tpu_custom_call.1} parent=95 // pred_fallthru
          _
      $region96: #{tpu_custom_call.1} parent=5 // pred_fallthru
        _
    $region6: #{tpu_custom_call.1} parent=1 // loop_footer
      %s28 = sadd.s32 1, %s24
    $region7: #{tpu_custom_call.1} parent=1 // loop_footer_branch
      %23 = sbr.rel target = $region3
    $region8: #{tpu_custom_call.1} parent=1 // loop_exit
      _
    %1231 = vsyncpa [#allocation4], 1
    %s1232 = scalar_lea.sflag [#allocation4], 1
    %1233 = vsyncpa %s1232, 1
    %1234 = vsyncpa [#allocation7], 1
    %1235 = vsyncpa [#allocation10], 1
    %1236 = vsyncpa [#allocation13], 1
    %1237 = vsyncpa [#allocation5], 1
    %s1238 = scalar_lea.sflag [#allocation5], 1
    %1239 = vsyncpa %s1238, 1

</llo_original>
